<compile_context>
chip_gen: v6e
topology: v6e:2x2x1
jax: 0.10.0
libtpu: 0.0.40
codegen_flags: <defaults>
</compile_context>

<pallas_src>
import jax
import jax.numpy as jnp
from jax.experimental import pallas as pl
from jax.experimental.pallas import tpu as pltpu


_OF_CHUNK = 256  # lane-chunk of the output-feature axis (2 lane tiles)


def _reshape_to_condition_kernel(x_ref, wl_ref, wc_ref, bias_ref, o_ref):
    # x_ref   : (C, HW)   one batch element (f32 or bf16)
    # wl_ref  : (OF, HW)  linear weight, native PyTorch layout (f32 or bf16)
    # wc_ref  : (OC, C)   1x1-conv weight (f32, tiny)
    # bias_ref: (OC, OF)  precomputed fused bias  bc @ rowsum(lin_w) + bl  (f32)
    # o_ref   : (OC, OF)
    C, _ = x_ref.shape
    OC, OF = o_ref.shape

    # Dominant contraction on the MXU: T = X @ Wl^T  (K = HW, N = OF).
    # Transposed-RHS dimension numbers avoid any materialized weight transpose.
    t = jax.lax.dot_general(
        x_ref[...], wl_ref[...],
        dimension_numbers=(((1,), (1,)), ((), ())),
        preferred_element_type=jnp.float32,
    )  # (C, OF) f32 -- only ~8 vregs live

    # Channel mix (K = C = 4) on the VPU as unrolled outer-product FMAs.
    wc = wc_ref[...].astype(jnp.float32)          # (OC, C)
    wc_cols = [wc[:, c:c + 1] for c in range(C)]  # hoisted (OC, 1) columns

    # Chunk OF so each live (OC, chunk) accumulator stays well under 64 vregs.
    chunk = _OF_CHUNK if (OF % _OF_CHUNK == 0) else OF
    for j in range(OF // chunk):
        lo, hi = j * chunk, (j + 1) * chunk
        acc = bias_ref[:, lo:hi]                   # (OC, chunk) f32
        for c in range(C):
            acc = acc + wc_cols[c] * t[c:c + 1, lo:hi]
        o_ref[:, lo:hi] = acc.astype(o_ref.dtype)


def reshape_to_condition(x_nchw, conv_w, conv_b, lin_w, lin_b, *, compute_dtype=None):
    """x_nchw: (B, C, H, W); conv_w: (77, C, 1, 1); conv_b: (77,);
    lin_w: (1024, H*W)  (PyTorch nn.Linear layout); lin_b: (1024,).
    Returns (B, 77, 1024) in x_nchw.dtype.

    compute_dtype: optional dtype (e.g. jnp.bfloat16) for the MXU-contraction
    inputs (x, lin_w); accumulation and bias stay f32.
    """
    B, C, H, W = x_nchw.shape
    HW = H * W
    OC = conv_w.shape[0]          # 77
    OF, HW_w = lin_w.shape        # 1024, H*W
    assert HW_w == HW
    # NOTE: block shapes below use full array dims, so HW need not be a
    # multiple of 128 for correctness; pad HW for best layout if it is not.

    x = x_nchw.reshape(B, C, HW)
    wc = conv_w.reshape(OC, C).astype(jnp.float32)

    # Fold the 1x1-conv bias through the linear layer (batch independent):
    #   (Wc X + bc 1^T) Wl^T + bl  ==  Wc (X Wl^T) + bc (Wl 1)^T + bl
    rowsum = jnp.sum(lin_w.astype(jnp.float32), axis=1)                 # (OF,)
    bias = (conv_b.astype(jnp.float32)[:, None] * rowsum[None, :]
            + lin_b.astype(jnp.float32)[None, :])                       # (OC, OF)

    wl = lin_w
    if compute_dtype is not None:
        x = x.astype(compute_dtype)
        wl = wl.astype(compute_dtype)

    grid_spec = pltpu.PrefetchScalarGridSpec(
        num_scalar_prefetch=0,
        # Batch axis on the grid, marked "parallel": on v7x the two TensorCores
        # split the batches.  On v5e/v6e (1 TC) this is a serial loop costing
        # ~0.35 us/step; weights/bias are grid-invariant so they are DMA'd once
        # and stay resident in VMEM across all batches.
        grid=(B,),
        in_specs=[
            pl.BlockSpec((None, C, HW), lambda b: (b, 0, 0)),   # per-batch activations
            pl.BlockSpec((OF, HW), lambda b: (0, 0)),           # linear weight (native layout)
            pl.BlockSpec((OC, C), lambda b: (0, 0)),            # conv weight
            pl.BlockSpec((OC, OF), lambda b: (0, 0)),           # fused bias
        ],
        out_specs=pl.BlockSpec((None, OC, OF), lambda b: (b, 0, 0)),
    )

    return pl.pallas_call(
        _reshape_to_condition_kernel,
        out_shape=jax.ShapeDtypeStruct((B, OC, OF), x_nchw.dtype),
        grid_spec=grid_spec,
        compiler_params=pltpu.CompilerParams(
            dimension_semantics=("parallel",)),
    )(x, wl, wc, bias)


def reference(x_nchw, conv_w, conv_b, lin_w, lin_b):
    B, C, H, W = x_nchw.shape
    OC = conv_w.shape[0]
    hp = jax.lax.Precision.HIGHEST
    y = jnp.einsum("oc,bchw->bohw", conv_w.reshape(OC, C), x_nchw, precision=hp)
    y = y + conv_b[None, :, None, None]
    y = y.reshape(B, OC, H * W)
    z = jnp.einsum("bok,fk->bof", y, lin_w, precision=hp)
    z = z + lin_b[None, None, :]
    return z


if __name__ == "__main__":
    B, C, H, W = 2, 4, 16, 16
    HW = H * W

    key = jax.random.PRNGKey(0)
    k1, k2, k3, k4, k5 = jax.random.split(key, 5)

    x = jax.random.normal(k1, (B, C, H, W), dtype=jnp.float32)
    # Deterministic parameter init (shapes from nn.Conv2d(C,77,1) / nn.Linear(HW,1024)).
    conv_w = jax.random.normal(k2, (77, C, 1, 1), dtype=jnp.float32) * (1.0 / C) ** 0.5
    conv_b = jax.random.normal(k3, (77,), dtype=jnp.float32) * 0.5
    lin_w = jax.random.normal(k4, (1024, HW), dtype=jnp.float32) * (1.0 / HW) ** 0.5
    lin_b = jax.random.normal(k5, (1024,), dtype=jnp.float32) * 0.5

    ref = reference(x, conv_w, conv_b, lin_w, lin_b)

    # f32 path (module-faithful numerics up to fp32 reassociation / MXU rounding).
    out = jax.block_until_ready(reshape_to_condition(x, conv_w, conv_b, lin_w, lin_b))
    assert out.shape == (B, 77, 1024), out.shape
    err = jnp.max(jnp.abs(out - ref))
    assert jnp.allclose(out, ref, atol=2e-2, rtol=2e-2), f"f32 path mismatch, max abs err={err}"

    # bf16-input path (single-pass MXU; f32 accumulation).
    out_bf16 = jax.block_until_ready(
        reshape_to_condition(x, conv_w, conv_b, lin_w, lin_b, compute_dtype=jnp.bfloat16))
    err_b = jnp.max(jnp.abs(out_bf16 - ref))
    assert jnp.allclose(out_bf16, ref, atol=5e-2, rtol=5e-2), f"bf16 path mismatch, max abs err={err_b}"

    print("KERNEL_OK")
</pallas_src>

<mosaic_0001>
module attributes {stable_mosaic.version = 11 : i64} {
  func.func @_reshape_to_condition_kernel(%arg0: i32, %arg1: memref<1x4x256xf32, #tpu.memory_space<vmem>>, %arg2: memref<1024x256xf32, #tpu.memory_space<vmem>>, %arg3: memref<77x4xf32, #tpu.memory_space<vmem>>, %arg4: memref<77x1024xf32, #tpu.memory_space<vmem>>, %arg5: memref<1x77x1024xf32, #tpu.memory_space<vmem>>) attributes {dimension_semantics = [#tpu.dimension_semantics<parallel>], iteration_bounds = array<i64: 2>, scalar_prefetch = 0 : i64, scratch_operands = 0 : i64, tpu.core_type = #tpu.core_type<tc>, window_params = [{transform_indices = @transform_0, window_bounds = array<i64: 1, 4, 256>}, {pipeline_mode = #tpu.pipeline_mode<synchronous>, transform_indices = @transform_1, window_bounds = array<i64: 1024, 256>}, {pipeline_mode = #tpu.pipeline_mode<synchronous>, transform_indices = @transform_2, window_bounds = array<i64: 77, 4>}, {pipeline_mode = #tpu.pipeline_mode<synchronous>, transform_indices = @transform_3, window_bounds = array<i64: 77, 1024>}, {transform_indices = @transform_4, window_bounds = array<i64: 1, 77, 1024>}]} {
    %c0 = arith.constant 0 : index
    %c0_0 = arith.constant 0 : index
    %c0_1 = arith.constant 0 : index
    %0 = vector.load %arg1[%c0, %c0_0, %c0_1] : memref<1x4x256xf32, #tpu.memory_space<vmem>>, vector<1x4x256xf32>
    %1 = vector.shape_cast %0 : vector<1x4x256xf32> to vector<4x256xf32>
    %c0_2 = arith.constant 0 : index
    %c0_3 = arith.constant 0 : index
    %2 = vector.load %arg2[%c0_2, %c0_3] : memref<1024x256xf32, #tpu.memory_space<vmem>>, vector<1024x256xf32>
    %cst = arith.constant dense<0.000000e+00> : vector<4x1024xf32>
    %3 = tpu.matmul %1, %2, %cst {dimension_numbers = #tpu.dot_dimension_numbers<[1], [1], [0], [0], [0, 0, 1, 0], [], []>} : vector<4x256xf32>, vector<1024x256xf32>, vector<4x1024xf32> -> vector<4x1024xf32>
    %c0_4 = arith.constant 0 : index
    %c0_5 = arith.constant 0 : index
    %4 = vector.load %arg3[%c0_4, %c0_5] : memref<77x4xf32, #tpu.memory_space<vmem>>, vector<77x4xf32>
    %5 = vector.extract_strided_slice %4 {offsets = [0, 0], sizes = [77, 1], strides = [1, 1]} : vector<77x4xf32> to vector<77x1xf32>
    %6 = vector.extract_strided_slice %4 {offsets = [0, 1], sizes = [77, 1], strides = [1, 1]} : vector<77x4xf32> to vector<77x1xf32>
    %7 = vector.extract_strided_slice %4 {offsets = [0, 2], sizes = [77, 1], strides = [1, 1]} : vector<77x4xf32> to vector<77x1xf32>
    %8 = vector.extract_strided_slice %4 {offsets = [0, 3], sizes = [77, 1], strides = [1, 1]} : vector<77x4xf32> to vector<77x1xf32>
    %c0_6 = arith.constant 0 : index
    %c0_7 = arith.constant 0 : index
    %9 = vector.load %arg4[%c0_6, %c0_7] : memref<77x1024xf32, #tpu.memory_space<vmem>>, vector<77x256xf32>
    %10 = vector.extract_strided_slice %3 {offsets = [0, 0], sizes = [1, 256], strides = [1, 1]} : vector<4x1024xf32> to vector<1x256xf32>
    %11 = vector.broadcast %5 : vector<77x1xf32> to vector<77x256xf32>
    %12 = vector.broadcast %10 : vector<1x256xf32> to vector<77x256xf32>
    %13 = arith.mulf %11, %12 : vector<77x256xf32>
    %14 = arith.addf %9, %13 : vector<77x256xf32>
    %15 = vector.extract_strided_slice %3 {offsets = [1, 0], sizes = [1, 256], strides = [1, 1]} : vector<4x1024xf32> to vector<1x256xf32>
    %16 = vector.broadcast %6 : vector<77x1xf32> to vector<77x256xf32>
    %17 = vector.broadcast %15 : vector<1x256xf32> to vector<77x256xf32>
    %18 = arith.mulf %16, %17 : vector<77x256xf32>
    %19 = arith.addf %14, %18 : vector<77x256xf32>
    %20 = vector.extract_strided_slice %3 {offsets = [2, 0], sizes = [1, 256], strides = [1, 1]} : vector<4x1024xf32> to vector<1x256xf32>
    %21 = vector.broadcast %7 : vector<77x1xf32> to vector<77x256xf32>
    %22 = vector.broadcast %20 : vector<1x256xf32> to vector<77x256xf32>
    %23 = arith.mulf %21, %22 : vector<77x256xf32>
    %24 = arith.addf %19, %23 : vector<77x256xf32>
    %25 = vector.extract_strided_slice %3 {offsets = [3, 0], sizes = [1, 256], strides = [1, 1]} : vector<4x1024xf32> to vector<1x256xf32>
    %26 = vector.broadcast %8 : vector<77x1xf32> to vector<77x256xf32>
    %27 = vector.broadcast %25 : vector<1x256xf32> to vector<77x256xf32>
    %28 = arith.mulf %26, %27 : vector<77x256xf32>
    %29 = arith.addf %24, %28 : vector<77x256xf32>
    %c0_8 = arith.constant 0 : index
    %c0_9 = arith.constant 0 : index
    %c0_10 = arith.constant 0 : index
    %30 = vector.load %arg5[%c0_8, %c0_9, %c0_10] : memref<1x77x1024xf32, #tpu.memory_space<vmem>>, vector<1x77x256xf32>
    %31 = vector.shape_cast %30 : vector<1x77x256xf32> to vector<77x256xf32>
    %32 = vector.shape_cast %29 : vector<77x256xf32> to vector<1x77x256xf32>
    tpu.vector_store %arg5[%c0_8, %c0_9, %c0_10], %32 {strides = array<i32>} : memref<1x77x1024xf32, #tpu.memory_space<vmem>>, vector<1x77x256xf32>,
    %c0_11 = arith.constant 0 : index
    %c256 = arith.constant 256 : index
    %33 = vector.load %arg4[%c0_11, %c256] : memref<77x1024xf32, #tpu.memory_space<vmem>>, vector<77x256xf32>
    %34 = vector.extract_strided_slice %3 {offsets = [0, 256], sizes = [1, 256], strides = [1, 1]} : vector<4x1024xf32> to vector<1x256xf32>
    %35 = vector.broadcast %5 : vector<77x1xf32> to vector<77x256xf32>
    %36 = vector.broadcast %34 : vector<1x256xf32> to vector<77x256xf32>
    %37 = arith.mulf %35, %36 : vector<77x256xf32>
    %38 = arith.addf %33, %37 : vector<77x256xf32>
    %39 = vector.extract_strided_slice %3 {offsets = [1, 256], sizes = [1, 256], strides = [1, 1]} : vector<4x1024xf32> to vector<1x256xf32>
    %40 = vector.broadcast %6 : vector<77x1xf32> to vector<77x256xf32>
    %41 = vector.broadcast %39 : vector<1x256xf32> to vector<77x256xf32>
    %42 = arith.mulf %40, %41 : vector<77x256xf32>
    %43 = arith.addf %38, %42 : vector<77x256xf32>
    %44 = vector.extract_strided_slice %3 {offsets = [2, 256], sizes = [1, 256], strides = [1, 1]} : vector<4x1024xf32> to vector<1x256xf32>
    %45 = vector.broadcast %7 : vector<77x1xf32> to vector<77x256xf32>
    %46 = vector.broadcast %44 : vector<1x256xf32> to vector<77x256xf32>
    %47 = arith.mulf %45, %46 : vector<77x256xf32>
    %48 = arith.addf %43, %47 : vector<77x256xf32>
    %49 = vector.extract_strided_slice %3 {offsets = [3, 256], sizes = [1, 256], strides = [1, 1]} : vector<4x1024xf32> to vector<1x256xf32>
    %50 = vector.broadcast %8 : vector<77x1xf32> to vector<77x256xf32>
    %51 = vector.broadcast %49 : vector<1x256xf32> to vector<77x256xf32>
    %52 = arith.mulf %50, %51 : vector<77x256xf32>
    %53 = arith.addf %48, %52 : vector<77x256xf32>
    %c0_12 = arith.constant 0 : index
    %c0_13 = arith.constant 0 : index
    %c256_14 = arith.constant 256 : index
    %54 = vector.load %arg5[%c0_12, %c0_13, %c256_14] : memref<1x77x1024xf32, #tpu.memory_space<vmem>>, vector<1x77x256xf32>
    %55 = vector.shape_cast %54 : vector<1x77x256xf32> to vector<77x256xf32>
    %56 = vector.shape_cast %53 : vector<77x256xf32> to vector<1x77x256xf32>
    tpu.vector_store %arg5[%c0_12, %c0_13, %c256_14], %56 {strides = array<i32>} : memref<1x77x1024xf32, #tpu.memory_space<vmem>>, vector<1x77x256xf32>,
    %c0_15 = arith.constant 0 : index
    %c512 = arith.constant 512 : index
    %57 = vector.load %arg4[%c0_15, %c512] : memref<77x1024xf32, #tpu.memory_space<vmem>>, vector<77x256xf32>
    %58 = vector.extract_strided_slice %3 {offsets = [0, 512], sizes = [1, 256], strides = [1, 1]} : vector<4x1024xf32> to vector<1x256xf32>
    %59 = vector.broadcast %5 : vector<77x1xf32> to vector<77x256xf32>
    %60 = vector.broadcast %58 : vector<1x256xf32> to vector<77x256xf32>
    %61 = arith.mulf %59, %60 : vector<77x256xf32>
    %62 = arith.addf %57, %61 : vector<77x256xf32>
    %63 = vector.extract_strided_slice %3 {offsets = [1, 512], sizes = [1, 256], strides = [1, 1]} : vector<4x1024xf32> to vector<1x256xf32>
    %64 = vector.broadcast %6 : vector<77x1xf32> to vector<77x256xf32>
    %65 = vector.broadcast %63 : vector<1x256xf32> to vector<77x256xf32>
    %66 = arith.mulf %64, %65 : vector<77x256xf32>
    %67 = arith.addf %62, %66 : vector<77x256xf32>
    %68 = vector.extract_strided_slice %3 {offsets = [2, 512], sizes = [1, 256], strides = [1, 1]} : vector<4x1024xf32> to vector<1x256xf32>
    %69 = vector.broadcast %7 : vector<77x1xf32> to vector<77x256xf32>
    %70 = vector.broadcast %68 : vector<1x256xf32> to vector<77x256xf32>
    %71 = arith.mulf %69, %70 : vector<77x256xf32>
    %72 = arith.addf %67, %71 : vector<77x256xf32>
    %73 = vector.extract_strided_slice %3 {offsets = [3, 512], sizes = [1, 256], strides = [1, 1]} : vector<4x1024xf32> to vector<1x256xf32>
    %74 = vector.broadcast %8 : vector<77x1xf32> to vector<77x256xf32>
    %75 = vector.broadcast %73 : vector<1x256xf32> to vector<77x256xf32>
    %76 = arith.mulf %74, %75 : vector<77x256xf32>
    %77 = arith.addf %72, %76 : vector<77x256xf32>
    %c0_16 = arith.constant 0 : index
    %c0_17 = arith.constant 0 : index
    %c512_18 = arith.constant 512 : index
    %78 = vector.load %arg5[%c0_16, %c0_17, %c512_18] : memref<1x77x1024xf32, #tpu.memory_space<vmem>>, vector<1x77x256xf32>
    %79 = vector.shape_cast %78 : vector<1x77x256xf32> to vector<77x256xf32>
    %80 = vector.shape_cast %77 : vector<77x256xf32> to vector<1x77x256xf32>
    tpu.vector_store %arg5[%c0_16, %c0_17, %c512_18], %80 {strides = array<i32>} : memref<1x77x1024xf32, #tpu.memory_space<vmem>>, vector<1x77x256xf32>,
    %c0_19 = arith.constant 0 : index
    %c768 = arith.constant 768 : index
    %81 = vector.load %arg4[%c0_19, %c768] : memref<77x1024xf32, #tpu.memory_space<vmem>>, vector<77x256xf32>
    %82 = vector.extract_strided_slice %3 {offsets = [0, 768], sizes = [1, 256], strides = [1, 1]} : vector<4x1024xf32> to vector<1x256xf32>
    %83 = vector.broadcast %5 : vector<77x1xf32> to vector<77x256xf32>
    %84 = vector.broadcast %82 : vector<1x256xf32> to vector<77x256xf32>
    %85 = arith.mulf %83, %84 : vector<77x256xf32>
    %86 = arith.addf %81, %85 : vector<77x256xf32>
    %87 = vector.extract_strided_slice %3 {offsets = [1, 768], sizes = [1, 256], strides = [1, 1]} : vector<4x1024xf32> to vector<1x256xf32>
    %88 = vector.broadcast %6 : vector<77x1xf32> to vector<77x256xf32>
    %89 = vector.broadcast %87 : vector<1x256xf32> to vector<77x256xf32>
    %90 = arith.mulf %88, %89 : vector<77x256xf32>
    %91 = arith.addf %86, %90 : vector<77x256xf32>
    %92 = vector.extract_strided_slice %3 {offsets = [2, 768], sizes = [1, 256], strides = [1, 1]} : vector<4x1024xf32> to vector<1x256xf32>
    %93 = vector.broadcast %7 : vector<77x1xf32> to vector<77x256xf32>
    %94 = vector.broadcast %92 : vector<1x256xf32> to vector<77x256xf32>
    %95 = arith.mulf %93, %94 : vector<77x256xf32>
    %96 = arith.addf %91, %95 : vector<77x256xf32>
    %97 = vector.extract_strided_slice %3 {offsets = [3, 768], sizes = [1, 256], strides = [1, 1]} : vector<4x1024xf32> to vector<1x256xf32>
    %98 = vector.broadcast %8 : vector<77x1xf32> to vector<77x256xf32>
    %99 = vector.broadcast %97 : vector<1x256xf32> to vector<77x256xf32>
    %100 = arith.mulf %98, %99 : vector<77x256xf32>
    %101 = arith.addf %96, %100 : vector<77x256xf32>
    %c0_20 = arith.constant 0 : index
    %c0_21 = arith.constant 0 : index
    %c768_22 = arith.constant 768 : index
    %102 = vector.load %arg5[%c0_20, %c0_21, %c768_22] : memref<1x77x1024xf32, #tpu.memory_space<vmem>>, vector<1x77x256xf32>
    %103 = vector.shape_cast %102 : vector<1x77x256xf32> to vector<77x256xf32>
    %104 = vector.shape_cast %101 : vector<77x256xf32> to vector<1x77x256xf32>
    tpu.vector_store %arg5[%c0_20, %c0_21, %c768_22], %104 {strides = array<i32>} : memref<1x77x1024xf32, #tpu.memory_space<vmem>>, vector<1x77x256xf32>,
    return
  }
  func.func @transform_0(%arg0: i32) -> (i32, i32, i32) {
    %c0_i32 = arith.constant 0 : i32
    %c0_i32_0 = arith.constant 0 : i32
    %c0_i32_1 = arith.constant 0 : i32
    return %arg0, %c0_i32, %c0_i32_0 : i32, i32, i32
  }
  func.func @transform_1(%arg0: i32) -> (i32, i32) {
    %c0_i32 = arith.constant 0 : i32
    %c0_i32_0 = arith.constant 0 : i32
    %c0_i32_1 = arith.constant 0 : i32
    return %c0_i32, %c0_i32_0 : i32, i32
  }
  func.func @transform_2(%arg0: i32) -> (i32, i32) {
    %c0_i32 = arith.constant 0 : i32
    %c0_i32_0 = arith.constant 0 : i32
    %c0_i32_1 = arith.constant 0 : i32
    return %c0_i32, %c0_i32_0 : i32, i32
  }
  func.func @transform_3(%arg0: i32) -> (i32, i32) {
    %c0_i32 = arith.constant 0 : i32
    %c0_i32_0 = arith.constant 0 : i32
    %c0_i32_1 = arith.constant 0 : i32
    return %c0_i32, %c0_i32_0 : i32, i32
  }
  func.func @transform_4(%arg0: i32) -> (i32, i32, i32) {
    %c0_i32 = arith.constant 0 : i32
    %c0_i32_0 = arith.constant 0 : i32
    %c0_i32_1 = arith.constant 0 : i32
    return %arg0, %c0_i32, %c0_i32_0 : i32, i32, i32
  }
}

</mosaic_0001>

<llo_original>
// kernel: tpu_custom_call.1
$region0: #{tpu_custom_call.1}
  #allocation0 [shape = 'u32[]', space=smem, size = 0x4, offset = 0x4, fixed_abs, tag = 'smem constant byte address 0x4 - core index']
  #allocation1 [shape = 'u32[144,128]{1,0:T(1,128)}', space=vmem, size = 0x12000, scoped, tag = 'internal scratch']
  %s0 = inlined_call_operand.vmem [shape: f32[2,4,256], index: 0, kind: input, shape index: {}]
  %s1 = inlined_call_operand.hbm [shape: f32[1024,256], index: 1, kind: input, shape index: {}]
  %s2 = inlined_call_operand.vmem [shape: f32[77,4], index: 2, kind: input, shape index: {}]
  %s3 = inlined_call_operand.hbm [shape: f32[77,1024], index: 3, kind: input, shape index: {}]
  %s4 = inlined_call_operand.vmem [shape: f32[2,77,1024], index: 4, kind: output, shape index: {}]
  %s5 = sld [smem:[#allocation0]]
  $region57: #{tpu_custom_call.1} parent=0
    _
  %s7 = ssub.s32 1, %s5
  %s8 = scalar_select 0, %s7, %s5
  $region1: #{tpu_custom_call.1} parent=0
    #allocation2 [shape = 'u8[1048576]{0}', space=vmem, size = 0x100000, scoped, tag = 'input window, operand 1, single buffered']
    #allocation3 [shape = 's32[2]{0}', space=sflag, size = 0x8, scoped, tag = 'scoped memory for tpu_custom_call.1']
    #allocation4 [shape = 'u8[327680]{0}', space=vmem, size = 0x50000, scoped, tag = 'input window, operand 3, single buffered']
    #allocation5 [shape = 's32[1]{0}', space=sflag, size = 0x4, scoped, tag = 'scoped memory for tpu_custom_call.1']
    %9 = vsyncpa [#allocation3], 0
    %10 = vsyncpa [#allocation5], 0
    loop: start=0, step=1, limit=4
    $region2: #{tpu_custom_call.1} parent=1 // loop_pre_header
      _
    $region3: #{tpu_custom_call.1} parent=1 // loop_header
      %s12 = sphi 0, %s16
      %p13 = scmp.ge.s32.totalorder %s12, 4
      %s22 = sphi 0, %s24
      %s25 = sphi 0, %s22
      %s26 = sphi 0, %s25
      %s42 = sphi 0, %s26
      %s46 = sphi 0, %s46
      %s48 = sphi 0, %s46
      %s49 = sphi 0, %s48
      %s63 = sphi 0, %s49
      %s67 = sphi 0, %s67
      %s69 = sphi 0, %s67
      %s70 = sphi 0, %s69
      %s84 = sphi 0, %s70
      %s88 = sphi 0, %s88
      %s90 = sphi 0, %s88
      %s91 = sphi 0, %s90
      %s105 = sphi 0, %s91
      %s111 = sphi 0, %s113
      %s114 = sphi 0, %s111
      %s115 = sphi 0, %s114
      %s131 = sphi 0, %s115
    $region4: #{tpu_custom_call.1} parent=1 // loop_header_branch
      %15 = sbr.rel (%p13) target = $region8
    $region5: #{tpu_custom_call.1} parent=1 // loop_body
      %s17 = ssub.s32 %s12, 1
      %s18 = ssub.s32 %s12, 2
      %s19 = sadd.s32 %s12, 1
      %s20 = ssub.s32 %s12, %s19
      %p21 = scmp.eq.s32.totalorder %s20, 0
      %s23 = sadd.s32 %s22, 1
      %s24 = scalar_select %p21, %s22, %s23
      %p27 = pneg %p21
      %p28 = scmp.eq.s32.totalorder %s12, 1
      %p29 = por %p27, %p28
      %p30 = scmp.ne.s32.totalorder %s22, %s25
      %p31 = scmp.eq.s32.totalorder %s12, 0
      %p32 = por %p30, %p31
      %p33 = scmp.ne.s32.totalorder %s22, %s25
      %p34 = scmp.eq.s32.totalorder %s17, 1
      %p35 = por %p33, %p34
      %p36 = scmp.ne.s32.totalorder %s25, %s26
      %p37 = scmp.eq.s32.totalorder %s17, 0
      %p38 = por %p36, %p37
      %p39 = scmp.ne.s32.totalorder %s25, %s26
      %p40 = scmp.eq.s32.totalorder %s18, 1
      %p41 = por %p39, %p40
      %p43 = scmp.ne.s32.totalorder %s26, %s42
      %p44 = scmp.eq.s32.totalorder %s18, 0
      %p45 = por %p43, %p44
      %s47 = sadd.s32 %s46, 1
      %p50 = scmp.eq.s32.totalorder %s12, 1
      %p51 = scmp.ne.s32.totalorder %s46, %s48
      %p52 = scmp.eq.s32.totalorder %s12, 0
      %p53 = por %p51, %p52
      %p54 = scmp.ne.s32.totalorder %s46, %s48
      %p55 = scmp.eq.s32.totalorder %s17, 1
      %p56 = por %p54, %p55
      %p57 = scmp.ne.s32.totalorder %s48, %s49
      %p58 = scmp.eq.s32.totalorder %s17, 0
      %p59 = por %p57, %p58
      %p60 = scmp.ne.s32.totalorder %s48, %s49
      %p61 = scmp.eq.s32.totalorder %s18, 1
      %p62 = por %p60, %p61
      %p64 = scmp.ne.s32.totalorder %s49, %s63
      %p65 = scmp.eq.s32.totalorder %s18, 0
      %p66 = por %p64, %p65
      %s68 = sadd.s32 %s67, 1
      %p71 = scmp.eq.s32.totalorder %s12, 1
      %p72 = scmp.ne.s32.totalorder %s67, %s69
      %p73 = scmp.eq.s32.totalorder %s12, 0
      %p74 = por %p72, %p73
      %p75 = scmp.ne.s32.totalorder %s67, %s69
      %p76 = scmp.eq.s32.totalorder %s17, 1
      %p77 = por %p75, %p76
      %p78 = scmp.ne.s32.totalorder %s69, %s70
      %p79 = scmp.eq.s32.totalorder %s17, 0
      %p80 = por %p78, %p79
      %p81 = scmp.ne.s32.totalorder %s69, %s70
      %p82 = scmp.eq.s32.totalorder %s18, 1
      %p83 = por %p81, %p82
      %p85 = scmp.ne.s32.totalorder %s70, %s84
      %p86 = scmp.eq.s32.totalorder %s18, 0
      %p87 = por %p85, %p86
      %s89 = sadd.s32 %s88, 1
      %p92 = scmp.eq.s32.totalorder %s12, 1
      %p93 = scmp.ne.s32.totalorder %s88, %s90
      %p94 = scmp.eq.s32.totalorder %s12, 0
      %p95 = por %p93, %p94
      %p96 = scmp.ne.s32.totalorder %s88, %s90
      %p97 = scmp.eq.s32.totalorder %s17, 1
      %p98 = por %p96, %p97
      %p99 = scmp.ne.s32.totalorder %s90, %s91
      %p100 = scmp.eq.s32.totalorder %s17, 0
      %p101 = por %p99, %p100
      %p102 = scmp.ne.s32.totalorder %s90, %s91
      %p103 = scmp.eq.s32.totalorder %s18, 1
      %p104 = por %p102, %p103
      %p106 = scmp.ne.s32.totalorder %s91, %s105
      %p107 = scmp.eq.s32.totalorder %s18, 0
      %p108 = por %p106, %p107
      %s109 = ssub.s32 %s12, %s19
      %p110 = scmp.eq.s32.totalorder %s109, 0
      %s112 = sadd.s32 %s111, 1
      %s113 = scalar_select %p110, %s111, %s112
      %p116 = pneg %p110
      %p117 = scmp.eq.s32.totalorder %s12, 1
      %p118 = por %p116, %p117
      %p119 = scmp.ne.s32.totalorder %s111, %s114
      %p120 = scmp.eq.s32.totalorder %s12, 0
      %p121 = por %p119, %p120
      %p122 = scmp.ne.s32.totalorder %s111, %s114
      %p123 = scmp.eq.s32.totalorder %s17, 1
      %p124 = por %p122, %p123
      %p125 = scmp.ne.s32.totalorder %s114, %s115
      %p126 = scmp.eq.s32.totalorder %s17, 0
      %p127 = por %p125, %p126
      %p128 = scmp.ne.s32.totalorder %s114, %s115
      %p129 = scmp.eq.s32.totalorder %s18, 1
      %p130 = por %p128, %p129
      %p132 = scmp.ne.s32.totalorder %s115, %s131
      %p133 = scmp.eq.s32.totalorder %s18, 0
      %p134 = por %p132, %p133
      %p135 = scmp.le.s32.totalorder 1, %s12
      %p136 = scmp.lt.s32.totalorder %s12, 3
      %p137 = pnand %p135, %p136
      %p138 = pneg %p137
      // Predicated region
      $region9: #{tpu_custom_call.1} parent=5 // pred_check
        _
      $region10: #{tpu_custom_call.1} parent=5 // pred_check_branch
        %140 = sbr.rel (%p137) target = $region12
      $region11: #{tpu_custom_call.1} parent=5 // pred_region
        %s141 = ssub.s32 %s12, 1
        // Predicated region
        $region13: #{tpu_custom_call.1} parent=11 // pred_check
          %p142 = pneg %p59
        $region14: #{tpu_custom_call.1} parent=11 // pred_check_branch
          %144 = sbr.rel (%p142) target = $region16
        $region15: #{tpu_custom_call.1} parent=11 // pred_region
          %s146 = ssub.s32 32768, 32768
          %147 = vsyncadd [#allocation3], %s146
          %s148 = sshll.u32 [#allocation2], 4
          %s149 = int_to_ptr.vmem [resolvable:$true] %s148
          %154 = dma.hbm_to_vmem [thread:$0]  %s1, 32768, %s149, [#allocation3], 256, 256, 16
        $region16: #{tpu_custom_call.1} parent=11 // pred_fallthru
          _
        // Predicated region
        $region17: #{tpu_custom_call.1} parent=11 // pred_check
          %p155 = pneg %p80
        $region18: #{tpu_custom_call.1} parent=11 // pred_check_branch
          %157 = sbr.rel (%p155) target = $region20
        $region19: #{tpu_custom_call.1} parent=11 // pred_region
          _
        $region20: #{tpu_custom_call.1} parent=11 // pred_fallthru
          _
        // Predicated region
        $region21: #{tpu_custom_call.1} parent=11 // pred_check
          %p158 = pneg %p101
        $region22: #{tpu_custom_call.1} parent=11 // pred_check_branch
          %160 = sbr.rel (%p158) target = $region24
        $region23: #{tpu_custom_call.1} parent=11 // pred_region
          %s162 = ssub.s32 10240, 10240
          %163 = vsyncadd [#allocation5], %s162
          %s164 = sshll.u32 [#allocation4], 4
          %s165 = int_to_ptr.vmem [resolvable:$true] %s164
          %170 = dma.hbm_to_vmem [thread:$0]  %s3, 10240, %s165, [#allocation5], 1024, 1024, 64
        $region24: #{tpu_custom_call.1} parent=11 // pred_fallthru
          _
      $region12: #{tpu_custom_call.1} parent=5 // pred_fallthru
        _
      %p171 = scmp.lt.s32.totalorder %s12, 2
      // Predicated region
      $region25: #{tpu_custom_call.1} parent=5 // pred_check
        %p172 = pneg %p171
      $region26: #{tpu_custom_call.1} parent=5 // pred_check_branch
        %174 = sbr.rel (%p172) target = $region28
      $region27: #{tpu_custom_call.1} parent=5 // pred_region
        // Predicated region
        $region29: #{tpu_custom_call.1} parent=27 // pred_check
          %p175 = pneg %p32
        $region30: #{tpu_custom_call.1} parent=27 // pred_check_branch
          %177 = sbr.rel (%p175) target = $region32
        $region31: #{tpu_custom_call.1} parent=27 // pred_region
          %p178 = scmp.lt.s32.totalorder %s12, 1
          %s179 = scalar_select %p178, %s12, 1
          %s180 = smul.addr %s179, 2
          %s181 = smul.addr %s180, 4
          %s182 = scalar_lea.vmem %s0, %s181
        $region32: #{tpu_custom_call.1} parent=27 // pred_fallthru
          _
      $region28: #{tpu_custom_call.1} parent=5 // pred_fallthru
        _
      %p183 = scmp.le.s32.totalorder 1, %s12
      %p184 = scmp.lt.s32.totalorder %s12, 3
      %p185 = pnand %p183, %p184
      %p186 = pneg %p185
      // Predicated region
      $region33: #{tpu_custom_call.1} parent=5 // pred_check
        _
      $region34: #{tpu_custom_call.1} parent=5 // pred_check_branch
        %188 = sbr.rel (%p185) target = $region36
      $region35: #{tpu_custom_call.1} parent=5 // pred_region
        %s189 = ssub.s32 %s12, 1
        // Predicated region
        $region37: #{tpu_custom_call.1} parent=35 // pred_check
          %p190 = pneg %p59
        $region38: #{tpu_custom_call.1} parent=35 // pred_check_branch
          %192 = sbr.rel (%p190) target = $region40
        $region39: #{tpu_custom_call.1} parent=35 // pred_region
          %193 = dma.done [#allocation3], 32768
        $region40: #{tpu_custom_call.1} parent=35 // pred_fallthru
          _
        // Predicated region
        $region41: #{tpu_custom_call.1} parent=35 // pred_check
          %p194 = pneg %p101
        $region42: #{tpu_custom_call.1} parent=35 // pred_check_branch
          %196 = sbr.rel (%p194) target = $region44
        $region43: #{tpu_custom_call.1} parent=35 // pred_region
          %197 = dma.done [#allocation5], 10240
        $region44: #{tpu_custom_call.1} parent=35 // pred_fallthru
          _
        %p198 = scmp.lt.s32.totalorder %s17, 1
        %s199 = scalar_select %p198, %s17, 1
        %s200 = smul.addr %s199, 2
        %s201 = smul.addr %s200, 4
        %s202 = scalar_lea.vmem %s0, %s201
        %p203 = pneg %p38
        %p204 = pneg %p35
        %p205 = pneg %p59
        %p206 = pneg %p56
        %p207 = pneg %p80
        %p208 = pneg %p77
        %p209 = pneg %p101
        %p210 = pneg %p98
        %p211 = pneg %p127
        %p212 = pneg %p124
        %p213 = scmp.lt.s32.totalorder %s17, 1
        %s214 = scalar_select %p213, %s17, 1
        %s215 = smul.addr %s214, 80
        %s216 = smul.addr %s215, 8
        %s217 = scalar_lea.vmem %s4, %s216
        %p218 = scmp.lt.s32.totalorder %s17, 1
        %s219 = scalar_select %p218, %s17, 1
        %s220 = smul.addr %s219, 2
        %s221 = smul.addr %s220, 4
        %s222 = scalar_lea.vmem %s0, %s221
        %p223 = scmp.lt.s32.totalorder %s17, 1
        %s224 = scalar_select %p223, %s17, 1
        %s225 = smul.addr %s224, 80
        %s226 = smul.addr %s225, 8
        %s227 = scalar_lea.vmem %s4, %s226
        %v228 = vld [vmem:[%s222] sm:$0xff]
        %v229 = vld [vmem:[#allocation2] sm:$0xff]
        %v230 = vld [vmem:[#allocation2 + $0x8] sm:$0xff]
        %v231 = vld [vmem:[#allocation2 + $0x10] sm:$0xff]
        %v232 = vld [vmem:[#allocation2 + $0x18] sm:$0xff]
        %v233 = vld [vmem:[#allocation2 + $0x20] sm:$0xff]
        %v234 = vld [vmem:[#allocation2 + $0x28] sm:$0xff]
        %v235 = vld [vmem:[#allocation2 + $0x30] sm:$0xff]
        %v236 = vld [vmem:[#allocation2 + $0x38] sm:$0xff]
        %v237 = vld [vmem:[#allocation2 + $0x40] sm:$0xff]
        %v238 = vld [vmem:[#allocation2 + $0x48] sm:$0xff]
        %v239 = vld [vmem:[#allocation2 + $0x50] sm:$0xff]
        %v240 = vld [vmem:[#allocation2 + $0x58] sm:$0xff]
        %v241 = vld [vmem:[#allocation2 + $0x60] sm:$0xff]
        %v242 = vld [vmem:[#allocation2 + $0x68] sm:$0xff]
        %v243 = vld [vmem:[#allocation2 + $0x70] sm:$0xff]
        %v244 = vld [vmem:[#allocation2 + $0x78] sm:$0xff]
        %v245 = vld [vmem:[#allocation2 + $0x80] sm:$0xff]
        %v246 = vld [vmem:[#allocation2 + $0x88] sm:$0xff]
        %v247 = vld [vmem:[#allocation2 + $0x90] sm:$0xff]
        %v248 = vld [vmem:[#allocation2 + $0x98] sm:$0xff]
        %v249 = vld [vmem:[#allocation2 + $0xa0] sm:$0xff]
        %v250 = vld [vmem:[#allocation2 + $0xa8] sm:$0xff]
        %v251 = vld [vmem:[#allocation2 + $0xb0] sm:$0xff]
        %v252 = vld [vmem:[#allocation2 + $0xb8] sm:$0xff]
        %v253 = vld [vmem:[#allocation2 + $0xc0] sm:$0xff]
        %v254 = vld [vmem:[#allocation2 + $0xc8] sm:$0xff]
        %v255 = vld [vmem:[#allocation2 + $0xd0] sm:$0xff]
        %v256 = vld [vmem:[#allocation2 + $0xd8] sm:$0xff]
        %v257 = vld [vmem:[#allocation2 + $0xe0] sm:$0xff]
        %v258 = vld [vmem:[#allocation2 + $0xe8] sm:$0xff]
        %v259 = vld [vmem:[#allocation2 + $0xf0] sm:$0xff]
        %v260 = vld [vmem:[#allocation2 + $0xf8] sm:$0xff]
        %v261 = vld [vmem:[#allocation2 + $0x100] sm:$0xff]
        %v262 = vld [vmem:[#allocation2 + $0x108] sm:$0xff]
        %v263 = vld [vmem:[#allocation2 + $0x110] sm:$0xff]
        %v264 = vld [vmem:[#allocation2 + $0x118] sm:$0xff]
        %v265 = vld [vmem:[#allocation2 + $0x120] sm:$0xff]
        %v266 = vld [vmem:[#allocation2 + $0x128] sm:$0xff]
        %v267 = vld [vmem:[#allocation2 + $0x130] sm:$0xff]
        %v268 = vld [vmem:[#allocation2 + $0x138] sm:$0xff]
        %v269 = vld [vmem:[#allocation2 + $0x140] sm:$0xff]
        %v270 = vld [vmem:[#allocation2 + $0x148] sm:$0xff]
        %v271 = vld [vmem:[#allocation2 + $0x150] sm:$0xff]
        %v272 = vld [vmem:[#allocation2 + $0x158] sm:$0xff]
        %v273 = vld [vmem:[#allocation2 + $0x160] sm:$0xff]
        %v274 = vld [vmem:[#allocation2 + $0x168] sm:$0xff]
        %v275 = vld [vmem:[#allocation2 + $0x170] sm:$0xff]
        %v276 = vld [vmem:[#allocation2 + $0x178] sm:$0xff]
        %v277 = vld [vmem:[#allocation2 + $0x180] sm:$0xff]
        %v278 = vld [vmem:[#allocation2 + $0x188] sm:$0xff]
        %v279 = vld [vmem:[#allocation2 + $0x190] sm:$0xff]
        %v280 = vld [vmem:[#allocation2 + $0x198] sm:$0xff]
        %v281 = vld [vmem:[#allocation2 + $0x1a0] sm:$0xff]
        %v282 = vld [vmem:[#allocation2 + $0x1a8] sm:$0xff]
        %v283 = vld [vmem:[#allocation2 + $0x1b0] sm:$0xff]
        %v284 = vld [vmem:[#allocation2 + $0x1b8] sm:$0xff]
        %v285 = vld [vmem:[#allocation2 + $0x1c0] sm:$0xff]
        %v286 = vld [vmem:[#allocation2 + $0x1c8] sm:$0xff]
        %v287 = vld [vmem:[#allocation2 + $0x1d0] sm:$0xff]
        %v288 = vld [vmem:[#allocation2 + $0x1d8] sm:$0xff]
        %v289 = vld [vmem:[#allocation2 + $0x1e0] sm:$0xff]
        %v290 = vld [vmem:[#allocation2 + $0x1e8] sm:$0xff]
        %v291 = vld [vmem:[#allocation2 + $0x1f0] sm:$0xff]
        %v292 = vld [vmem:[#allocation2 + $0x1f8] sm:$0xff]
        %v293 = vld [vmem:[#allocation2 + $0x200] sm:$0xff]
        %v294 = vld [vmem:[#allocation2 + $0x208] sm:$0xff]
        %v295 = vld [vmem:[#allocation2 + $0x210] sm:$0xff]
        %v296 = vld [vmem:[#allocation2 + $0x218] sm:$0xff]
        %v297 = vld [vmem:[#allocation2 + $0x220] sm:$0xff]
        %v298 = vld [vmem:[#allocation2 + $0x228] sm:$0xff]
        %v299 = vld [vmem:[#allocation2 + $0x230] sm:$0xff]
        %v300 = vld [vmem:[#allocation2 + $0x238] sm:$0xff]
        %v301 = vld [vmem:[#allocation2 + $0x240] sm:$0xff]
        %v302 = vld [vmem:[#allocation2 + $0x248] sm:$0xff]
        %v303 = vld [vmem:[#allocation2 + $0x250] sm:$0xff]
        %v304 = vld [vmem:[#allocation2 + $0x258] sm:$0xff]
        %v305 = vld [vmem:[#allocation2 + $0x260] sm:$0xff]
        %v306 = vld [vmem:[#allocation2 + $0x268] sm:$0xff]
        %v307 = vld [vmem:[#allocation2 + $0x270] sm:$0xff]
        %v308 = vld [vmem:[#allocation2 + $0x278] sm:$0xff]
        %v309 = vld [vmem:[#allocation2 + $0x280] sm:$0xff]
        %v310 = vld [vmem:[#allocation2 + $0x288] sm:$0xff]
        %v311 = vld [vmem:[#allocation2 + $0x290] sm:$0xff]
        %v312 = vld [vmem:[#allocation2 + $0x298] sm:$0xff]
        %v313 = vld [vmem:[#allocation2 + $0x2a0] sm:$0xff]
        %v314 = vld [vmem:[#allocation2 + $0x2a8] sm:$0xff]
        %v315 = vld [vmem:[#allocation2 + $0x2b0] sm:$0xff]
        %v316 = vld [vmem:[#allocation2 + $0x2b8] sm:$0xff]
        %v317 = vld [vmem:[#allocation2 + $0x2c0] sm:$0xff]
        %v318 = vld [vmem:[#allocation2 + $0x2c8] sm:$0xff]
        %v319 = vld [vmem:[#allocation2 + $0x2d0] sm:$0xff]
        %v320 = vld [vmem:[#allocation2 + $0x2d8] sm:$0xff]
        %v321 = vld [vmem:[#allocation2 + $0x2e0] sm:$0xff]
        %v322 = vld [vmem:[#allocation2 + $0x2e8] sm:$0xff]
        %v323 = vld [vmem:[#allocation2 + $0x2f0] sm:$0xff]
        %v324 = vld [vmem:[#allocation2 + $0x2f8] sm:$0xff]
        %v325 = vld [vmem:[#allocation2 + $0x300] sm:$0xff]
        %v326 = vld [vmem:[#allocation2 + $0x308] sm:$0xff]
        %v327 = vld [vmem:[#allocation2 + $0x310] sm:$0xff]
        %v328 = vld [vmem:[#allocation2 + $0x318] sm:$0xff]
        %v329 = vld [vmem:[#allocation2 + $0x320] sm:$0xff]
        %v330 = vld [vmem:[#allocation2 + $0x328] sm:$0xff]
        %v331 = vld [vmem:[#allocation2 + $0x330] sm:$0xff]
        %v332 = vld [vmem:[#allocation2 + $0x338] sm:$0xff]
        %v333 = vld [vmem:[#allocation2 + $0x340] sm:$0xff]
        %v334 = vld [vmem:[#allocation2 + $0x348] sm:$0xff]
        %v335 = vld [vmem:[#allocation2 + $0x350] sm:$0xff]
        %v336 = vld [vmem:[#allocation2 + $0x358] sm:$0xff]
        %v337 = vld [vmem:[#allocation2 + $0x360] sm:$0xff]
        %v338 = vld [vmem:[#allocation2 + $0x368] sm:$0xff]
        %v339 = vld [vmem:[#allocation2 + $0x370] sm:$0xff]
        %v340 = vld [vmem:[#allocation2 + $0x378] sm:$0xff]
        %v341 = vld [vmem:[#allocation2 + $0x380] sm:$0xff]
        %v342 = vld [vmem:[#allocation2 + $0x388] sm:$0xff]
        %v343 = vld [vmem:[#allocation2 + $0x390] sm:$0xff]
        %v344 = vld [vmem:[#allocation2 + $0x398] sm:$0xff]
        %v345 = vld [vmem:[#allocation2 + $0x3a0] sm:$0xff]
        %v346 = vld [vmem:[#allocation2 + $0x3a8] sm:$0xff]
        %v347 = vld [vmem:[#allocation2 + $0x3b0] sm:$0xff]
        %v348 = vld [vmem:[#allocation2 + $0x3b8] sm:$0xff]
        %v349 = vld [vmem:[#allocation2 + $0x3c0] sm:$0xff]
        %v350 = vld [vmem:[#allocation2 + $0x3c8] sm:$0xff]
        %v351 = vld [vmem:[#allocation2 + $0x3d0] sm:$0xff]
        %v352 = vld [vmem:[#allocation2 + $0x3d8] sm:$0xff]
        %v353 = vld [vmem:[#allocation2 + $0x3e0] sm:$0xff]
        %v354 = vld [vmem:[#allocation2 + $0x3e8] sm:$0xff]
        %v355 = vld [vmem:[#allocation2 + $0x3f0] sm:$0xff]
        %v356 = vld [vmem:[#allocation2 + $0x3f8] sm:$0xff]
        %v357 = vld [vmem:[#allocation2 + $0x400] sm:$0xff]
        %v358 = vld [vmem:[#allocation2 + $0x408] sm:$0xff]
        %v359 = vld [vmem:[#allocation2 + $0x410] sm:$0xff]
        %v360 = vld [vmem:[#allocation2 + $0x418] sm:$0xff]
        %v361 = vld [vmem:[#allocation2 + $0x420] sm:$0xff]
        %v362 = vld [vmem:[#allocation2 + $0x428] sm:$0xff]
        %v363 = vld [vmem:[#allocation2 + $0x430] sm:$0xff]
        %v364 = vld [vmem:[#allocation2 + $0x438] sm:$0xff]
        %v365 = vld [vmem:[#allocation2 + $0x440] sm:$0xff]
        %v366 = vld [vmem:[#allocation2 + $0x448] sm:$0xff]
        %v367 = vld [vmem:[#allocation2 + $0x450] sm:$0xff]
        %v368 = vld [vmem:[#allocation2 + $0x458] sm:$0xff]
        %v369 = vld [vmem:[#allocation2 + $0x460] sm:$0xff]
        %v370 = vld [vmem:[#allocation2 + $0x468] sm:$0xff]
        %v371 = vld [vmem:[#allocation2 + $0x470] sm:$0xff]
        %v372 = vld [vmem:[#allocation2 + $0x478] sm:$0xff]
        %v373 = vld [vmem:[#allocation2 + $0x480] sm:$0xff]
        %v374 = vld [vmem:[#allocation2 + $0x488] sm:$0xff]
        %v375 = vld [vmem:[#allocation2 + $0x490] sm:$0xff]
        %v376 = vld [vmem:[#allocation2 + $0x498] sm:$0xff]
        %v377 = vld [vmem:[#allocation2 + $0x4a0] sm:$0xff]
        %v378 = vld [vmem:[#allocation2 + $0x4a8] sm:$0xff]
        %v379 = vld [vmem:[#allocation2 + $0x4b0] sm:$0xff]
        %v380 = vld [vmem:[#allocation2 + $0x4b8] sm:$0xff]
        %v381 = vld [vmem:[#allocation2 + $0x4c0] sm:$0xff]
        %v382 = vld [vmem:[#allocation2 + $0x4c8] sm:$0xff]
        %v383 = vld [vmem:[#allocation2 + $0x4d0] sm:$0xff]
        %v384 = vld [vmem:[#allocation2 + $0x4d8] sm:$0xff]
        %v385 = vld [vmem:[#allocation2 + $0x4e0] sm:$0xff]
        %v386 = vld [vmem:[#allocation2 + $0x4e8] sm:$0xff]
        %v387 = vld [vmem:[#allocation2 + $0x4f0] sm:$0xff]
        %v388 = vld [vmem:[#allocation2 + $0x4f8] sm:$0xff]
        %v389 = vld [vmem:[#allocation2 + $0x500] sm:$0xff]
        %v390 = vld [vmem:[#allocation2 + $0x508] sm:$0xff]
        %v391 = vld [vmem:[#allocation2 + $0x510] sm:$0xff]
        %v392 = vld [vmem:[#allocation2 + $0x518] sm:$0xff]
        %v393 = vld [vmem:[#allocation2 + $0x520] sm:$0xff]
        %v394 = vld [vmem:[#allocation2 + $0x528] sm:$0xff]
        %v395 = vld [vmem:[#allocation2 + $0x530] sm:$0xff]
        %v396 = vld [vmem:[#allocation2 + $0x538] sm:$0xff]
        %v397 = vld [vmem:[#allocation2 + $0x540] sm:$0xff]
        %v398 = vld [vmem:[#allocation2 + $0x548] sm:$0xff]
        %v399 = vld [vmem:[#allocation2 + $0x550] sm:$0xff]
        %v400 = vld [vmem:[#allocation2 + $0x558] sm:$0xff]
        %v401 = vld [vmem:[#allocation2 + $0x560] sm:$0xff]
        %v402 = vld [vmem:[#allocation2 + $0x568] sm:$0xff]
        %v403 = vld [vmem:[#allocation2 + $0x570] sm:$0xff]
        %v404 = vld [vmem:[#allocation2 + $0x578] sm:$0xff]
        %v405 = vld [vmem:[#allocation2 + $0x580] sm:$0xff]
        %v406 = vld [vmem:[#allocation2 + $0x588] sm:$0xff]
        %v407 = vld [vmem:[#allocation2 + $0x590] sm:$0xff]
        %v408 = vld [vmem:[#allocation2 + $0x598] sm:$0xff]
        %v409 = vld [vmem:[#allocation2 + $0x5a0] sm:$0xff]
        %v410 = vld [vmem:[#allocation2 + $0x5a8] sm:$0xff]
        %v411 = vld [vmem:[#allocation2 + $0x5b0] sm:$0xff]
        %v412 = vld [vmem:[#allocation2 + $0x5b8] sm:$0xff]
        %v413 = vld [vmem:[#allocation2 + $0x5c0] sm:$0xff]
        %v414 = vld [vmem:[#allocation2 + $0x5c8] sm:$0xff]
        %v415 = vld [vmem:[#allocation2 + $0x5d0] sm:$0xff]
        %v416 = vld [vmem:[#allocation2 + $0x5d8] sm:$0xff]
        %v417 = vld [vmem:[#allocation2 + $0x5e0] sm:$0xff]
        %v418 = vld [vmem:[#allocation2 + $0x5e8] sm:$0xff]
        %v419 = vld [vmem:[#allocation2 + $0x5f0] sm:$0xff]
        %v420 = vld [vmem:[#allocation2 + $0x5f8] sm:$0xff]
        %v421 = vld [vmem:[#allocation2 + $0x600] sm:$0xff]
        %v422 = vld [vmem:[#allocation2 + $0x608] sm:$0xff]
        %v423 = vld [vmem:[#allocation2 + $0x610] sm:$0xff]
        %v424 = vld [vmem:[#allocation2 + $0x618] sm:$0xff]
        %v425 = vld [vmem:[#allocation2 + $0x620] sm:$0xff]
        %v426 = vld [vmem:[#allocation2 + $0x628] sm:$0xff]
        %v427 = vld [vmem:[#allocation2 + $0x630] sm:$0xff]
        %v428 = vld [vmem:[#allocation2 + $0x638] sm:$0xff]
        %v429 = vld [vmem:[#allocation2 + $0x640] sm:$0xff]
        %v430 = vld [vmem:[#allocation2 + $0x648] sm:$0xff]
        %v431 = vld [vmem:[#allocation2 + $0x650] sm:$0xff]
        %v432 = vld [vmem:[#allocation2 + $0x658] sm:$0xff]
        %v433 = vld [vmem:[#allocation2 + $0x660] sm:$0xff]
        %v434 = vld [vmem:[#allocation2 + $0x668] sm:$0xff]
        %v435 = vld [vmem:[#allocation2 + $0x670] sm:$0xff]
        %v436 = vld [vmem:[#allocation2 + $0x678] sm:$0xff]
        %v437 = vld [vmem:[#allocation2 + $0x680] sm:$0xff]
        %v438 = vld [vmem:[#allocation2 + $0x688] sm:$0xff]
        %v439 = vld [vmem:[#allocation2 + $0x690] sm:$0xff]
        %v440 = vld [vmem:[#allocation2 + $0x698] sm:$0xff]
        %v441 = vld [vmem:[#allocation2 + $0x6a0] sm:$0xff]
        %v442 = vld [vmem:[#allocation2 + $0x6a8] sm:$0xff]
        %v443 = vld [vmem:[#allocation2 + $0x6b0] sm:$0xff]
        %v444 = vld [vmem:[#allocation2 + $0x6b8] sm:$0xff]
        %v445 = vld [vmem:[#allocation2 + $0x6c0] sm:$0xff]
        %v446 = vld [vmem:[#allocation2 + $0x6c8] sm:$0xff]
        %v447 = vld [vmem:[#allocation2 + $0x6d0] sm:$0xff]
        %v448 = vld [vmem:[#allocation2 + $0x6d8] sm:$0xff]
        %v449 = vld [vmem:[#allocation2 + $0x6e0] sm:$0xff]
        %v450 = vld [vmem:[#allocation2 + $0x6e8] sm:$0xff]
        %v451 = vld [vmem:[#allocation2 + $0x6f0] sm:$0xff]
        %v452 = vld [vmem:[#allocation2 + $0x6f8] sm:$0xff]
        %v453 = vld [vmem:[#allocation2 + $0x700] sm:$0xff]
        %v454 = vld [vmem:[#allocation2 + $0x708] sm:$0xff]
        %v455 = vld [vmem:[#allocation2 + $0x710] sm:$0xff]
        %v456 = vld [vmem:[#allocation2 + $0x718] sm:$0xff]
        %v457 = vld [vmem:[#allocation2 + $0x720] sm:$0xff]
        %v458 = vld [vmem:[#allocation2 + $0x728] sm:$0xff]
        %v459 = vld [vmem:[#allocation2 + $0x730] sm:$0xff]
        %v460 = vld [vmem:[#allocation2 + $0x738] sm:$0xff]
        %v461 = vld [vmem:[#allocation2 + $0x740] sm:$0xff]
        %v462 = vld [vmem:[#allocation2 + $0x748] sm:$0xff]
        %v463 = vld [vmem:[#allocation2 + $0x750] sm:$0xff]
        %v464 = vld [vmem:[#allocation2 + $0x758] sm:$0xff]
        %v465 = vld [vmem:[#allocation2 + $0x760] sm:$0xff]
        %v466 = vld [vmem:[#allocation2 + $0x768] sm:$0xff]
        %v467 = vld [vmem:[#allocation2 + $0x770] sm:$0xff]
        %v468 = vld [vmem:[#allocation2 + $0x778] sm:$0xff]
        %v469 = vld [vmem:[#allocation2 + $0x780] sm:$0xff]
        %v470 = vld [vmem:[#allocation2 + $0x788] sm:$0xff]
        %v471 = vld [vmem:[#allocation2 + $0x790] sm:$0xff]
        %v472 = vld [vmem:[#allocation2 + $0x798] sm:$0xff]
        %v473 = vld [vmem:[#allocation2 + $0x7a0] sm:$0xff]
        %v474 = vld [vmem:[#allocation2 + $0x7a8] sm:$0xff]
        %v475 = vld [vmem:[#allocation2 + $0x7b0] sm:$0xff]
        %v476 = vld [vmem:[#allocation2 + $0x7b8] sm:$0xff]
        %v477 = vld [vmem:[#allocation2 + $0x7c0] sm:$0xff]
        %v478 = vld [vmem:[#allocation2 + $0x7c8] sm:$0xff]
        %v479 = vld [vmem:[#allocation2 + $0x7d0] sm:$0xff]
        %v480 = vld [vmem:[#allocation2 + $0x7d8] sm:$0xff]
        %v481 = vld [vmem:[#allocation2 + $0x7e0] sm:$0xff]
        %v482 = vld [vmem:[#allocation2 + $0x7e8] sm:$0xff]
        %v483 = vld [vmem:[#allocation2 + $0x7f0] sm:$0xff]
        %v484 = vld [vmem:[#allocation2 + $0x7f8] sm:$0xff]
        %v486 = vcombine.high %v228, %v228
        %488 = vmatprep.subr.mxu0 %v260
        %489 = vmatpush1.xpose.msra.mxu0 %v259
        %490 = vmatprep.subr.mxu0 %v258
        %491 = vmatpush1.xpose.msra.mxu0 %v257
        %492 = vmatprep.subr.mxu0 %v256
        %493 = vmatpush1.xpose.msra.mxu0 %v255
        %494 = vmatprep.subr.mxu0 %v254
        %495 = vmatpush1.xpose.msra.mxu0 %v253
        %496 = vmatprep.subr.mxu0 %v252
        %497 = vmatpush1.xpose.msra.mxu0 %v251
        %498 = vmatprep.subr.mxu0 %v250
        %499 = vmatpush1.xpose.msra.mxu0 %v249
        %500 = vmatprep.subr.mxu0 %v248
        %501 = vmatpush1.xpose.msra.mxu0 %v247
        %502 = vmatprep.subr.mxu0 %v246
        %503 = vmatpush1.xpose.msra.mxu0 %v245
        %504 = vmatprep.subr.mxu0 %v244
        %505 = vmatpush1.xpose.msra.mxu0 %v243
        %506 = vmatprep.subr.mxu0 %v242
        %507 = vmatpush1.xpose.msra.mxu0 %v241
        %508 = vmatprep.subr.mxu0 %v240
        %509 = vmatpush1.xpose.msra.mxu0 %v239
        %510 = vmatprep.subr.mxu0 %v238
        %511 = vmatpush1.xpose.msra.mxu0 %v237
        %512 = vmatprep.subr.mxu0 %v236
        %513 = vmatpush1.xpose.msra.mxu0 %v235
        %514 = vmatprep.subr.mxu0 %v234
        %515 = vmatpush1.xpose.msra.mxu0 %v233
        %516 = vmatprep.subr.mxu0 %v232
        %517 = vmatpush1.xpose.msra.mxu0 %v231
        %518 = vmatprep.subr.mxu0 %v230
        %519 = vmatpush1.xpose.msra.mxu0 %v229
        %520 = vmatprep.subr.mxu0 %v292
        %521 = vmatpush2.xpose.msra.mxu0 %v291
        %522 = vmatprep.subr.mxu0 %v290
        %523 = vmatpush2.xpose.msra.mxu0 %v289
        %524 = vmatprep.subr.mxu0 %v288
        %525 = vmatpush2.xpose.msra.mxu0 %v287
        %526 = vmatprep.subr.mxu0 %v286
        %527 = vmatpush2.xpose.msra.mxu0 %v285
        %528 = vmatprep.subr.mxu0 %v284
        %529 = vmatpush2.xpose.msra.mxu0 %v283
        %530 = vmatprep.subr.mxu0 %v282
        %531 = vmatpush2.xpose.msra.mxu0 %v281
        %532 = vmatprep.subr.mxu0 %v280
        %533 = vmatpush2.xpose.msra.mxu0 %v279
        %534 = vmatprep.subr.mxu0 %v278
        %535 = vmatpush2.xpose.msra.mxu0 %v277
        %536 = vmatprep.subr.mxu0 %v276
        %537 = vmatpush2.xpose.msra.mxu0 %v275
        %538 = vmatprep.subr.mxu0 %v274
        %539 = vmatpush2.xpose.msra.mxu0 %v273
        %540 = vmatprep.subr.mxu0 %v272
        %541 = vmatpush2.xpose.msra.mxu0 %v271
        %542 = vmatprep.subr.mxu0 %v270
        %543 = vmatpush2.xpose.msra.mxu0 %v269
        %544 = vmatprep.subr.mxu0 %v268
        %545 = vmatpush2.xpose.msra.mxu0 %v267
        %546 = vmatprep.subr.mxu0 %v266
        %547 = vmatpush2.xpose.msra.mxu0 %v265
        %548 = vmatprep.subr.mxu0 %v264
        %549 = vmatpush2.xpose.msra.mxu0 %v263
        %550 = vmatprep.subr.mxu0 %v262
        %551 = vmatpush2.xpose.msra.mxu0 %v261
        %552 = vmatprep.mubr.f32.mxu0 %v486
        %553 = vmatmul.mubr.f32.gmra.mxu0 %v228
        %v554 = vpop.f32.mrf.mxu0
        %v555 = vadd.f32 0.0, %v554
        %v556 = vpop.f32.mrf.mxu0
        %v557 = vadd.f32 0.0, %v556
        %558 = vdwg.mxu0
        %559 = vmatprep.subr.mxu0 %v324
        %560 = vmatpush1.xpose.msra.mxu0 %v323
        %561 = vmatprep.subr.mxu0 %v322
        %562 = vmatpush1.xpose.msra.mxu0 %v321
        %563 = vmatprep.subr.mxu0 %v320
        %564 = vmatpush1.xpose.msra.mxu0 %v319
        %565 = vmatprep.subr.mxu0 %v318
        %566 = vmatpush1.xpose.msra.mxu0 %v317
        %567 = vmatprep.subr.mxu0 %v316
        %568 = vmatpush1.xpose.msra.mxu0 %v315
        %569 = vmatprep.subr.mxu0 %v314
        %570 = vmatpush1.xpose.msra.mxu0 %v313
        %571 = vmatprep.subr.mxu0 %v312
        %572 = vmatpush1.xpose.msra.mxu0 %v311
        %573 = vmatprep.subr.mxu0 %v310
        %574 = vmatpush1.xpose.msra.mxu0 %v309
        %575 = vmatprep.subr.mxu0 %v308
        %576 = vmatpush1.xpose.msra.mxu0 %v307
        %577 = vmatprep.subr.mxu0 %v306
        %578 = vmatpush1.xpose.msra.mxu0 %v305
        %579 = vmatprep.subr.mxu0 %v304
        %580 = vmatpush1.xpose.msra.mxu0 %v303
        %581 = vmatprep.subr.mxu0 %v302
        %582 = vmatpush1.xpose.msra.mxu0 %v301
        %583 = vmatprep.subr.mxu0 %v300
        %584 = vmatpush1.xpose.msra.mxu0 %v299
        %585 = vmatprep.subr.mxu0 %v298
        %586 = vmatpush1.xpose.msra.mxu0 %v297
        %587 = vmatprep.subr.mxu0 %v296
        %588 = vmatpush1.xpose.msra.mxu0 %v295
        %589 = vmatprep.subr.mxu0 %v294
        %590 = vmatpush1.xpose.msra.mxu0 %v293
        %591 = vmatprep.subr.mxu0 %v356
        %592 = vmatpush2.xpose.msra.mxu0 %v355
        %593 = vmatprep.subr.mxu0 %v354
        %594 = vmatpush2.xpose.msra.mxu0 %v353
        %595 = vmatprep.subr.mxu0 %v352
        %596 = vmatpush2.xpose.msra.mxu0 %v351
        %597 = vmatprep.subr.mxu0 %v350
        %598 = vmatpush2.xpose.msra.mxu0 %v349
        %599 = vmatprep.subr.mxu0 %v348
        %600 = vmatpush2.xpose.msra.mxu0 %v347
        %601 = vmatprep.subr.mxu0 %v346
        %602 = vmatpush2.xpose.msra.mxu0 %v345
        %603 = vmatprep.subr.mxu0 %v344
        %604 = vmatpush2.xpose.msra.mxu0 %v343
        %605 = vmatprep.subr.mxu0 %v342
        %606 = vmatpush2.xpose.msra.mxu0 %v341
        %607 = vmatprep.subr.mxu0 %v340
        %608 = vmatpush2.xpose.msra.mxu0 %v339
        %609 = vmatprep.subr.mxu0 %v338
        %610 = vmatpush2.xpose.msra.mxu0 %v337
        %611 = vmatprep.subr.mxu0 %v336
        %612 = vmatpush2.xpose.msra.mxu0 %v335
        %613 = vmatprep.subr.mxu0 %v334
        %614 = vmatpush2.xpose.msra.mxu0 %v333
        %615 = vmatprep.subr.mxu0 %v332
        %616 = vmatpush2.xpose.msra.mxu0 %v331
        %617 = vmatprep.subr.mxu0 %v330
        %618 = vmatpush2.xpose.msra.mxu0 %v329
        %619 = vmatprep.subr.mxu0 %v328
        %620 = vmatpush2.xpose.msra.mxu0 %v327
        %621 = vmatprep.subr.mxu0 %v326
        %622 = vmatpush2.xpose.msra.mxu0 %v325
        %623 = vmatprep.mubr.f32.mxu0 %v486
        %624 = vmatmul.mubr.f32.gmra.mxu0 %v228
        %v625 = vpop.f32.mrf.mxu0
        %v626 = vadd.f32 0.0, %v625
        %v627 = vpop.f32.mrf.mxu0
        %v628 = vadd.f32 0.0, %v627
        %629 = vdwg.mxu0
        %630 = vmatprep.subr.mxu0 %v388
        %631 = vmatpush1.xpose.msra.mxu0 %v387
        %632 = vmatprep.subr.mxu0 %v386
        %633 = vmatpush1.xpose.msra.mxu0 %v385
        %634 = vmatprep.subr.mxu0 %v384
        %635 = vmatpush1.xpose.msra.mxu0 %v383
        %636 = vmatprep.subr.mxu0 %v382
        %637 = vmatpush1.xpose.msra.mxu0 %v381
        %638 = vmatprep.subr.mxu0 %v380
        %639 = vmatpush1.xpose.msra.mxu0 %v379
        %640 = vmatprep.subr.mxu0 %v378
        %641 = vmatpush1.xpose.msra.mxu0 %v377
        %642 = vmatprep.subr.mxu0 %v376
        %643 = vmatpush1.xpose.msra.mxu0 %v375
        %644 = vmatprep.subr.mxu0 %v374
        %645 = vmatpush1.xpose.msra.mxu0 %v373
        %646 = vmatprep.subr.mxu0 %v372
        %647 = vmatpush1.xpose.msra.mxu0 %v371
        %648 = vmatprep.subr.mxu0 %v370
        %649 = vmatpush1.xpose.msra.mxu0 %v369
        %650 = vmatprep.subr.mxu0 %v368
        %651 = vmatpush1.xpose.msra.mxu0 %v367
        %652 = vmatprep.subr.mxu0 %v366
        %653 = vmatpush1.xpose.msra.mxu0 %v365
        %654 = vmatprep.subr.mxu0 %v364
        %655 = vmatpush1.xpose.msra.mxu0 %v363
        %656 = vmatprep.subr.mxu0 %v362
        %657 = vmatpush1.xpose.msra.mxu0 %v361
        %658 = vmatprep.subr.mxu0 %v360
        %659 = vmatpush1.xpose.msra.mxu0 %v359
        %660 = vmatprep.subr.mxu0 %v358
        %661 = vmatpush1.xpose.msra.mxu0 %v357
        %662 = vmatprep.subr.mxu0 %v420
        %663 = vmatpush2.xpose.msra.mxu0 %v419
        %664 = vmatprep.subr.mxu0 %v418
        %665 = vmatpush2.xpose.msra.mxu0 %v417
        %666 = vmatprep.subr.mxu0 %v416
        %667 = vmatpush2.xpose.msra.mxu0 %v415
        %668 = vmatprep.subr.mxu0 %v414
        %669 = vmatpush2.xpose.msra.mxu0 %v413
        %670 = vmatprep.subr.mxu0 %v412
        %671 = vmatpush2.xpose.msra.mxu0 %v411
        %672 = vmatprep.subr.mxu0 %v410
        %673 = vmatpush2.xpose.msra.mxu0 %v409
        %674 = vmatprep.subr.mxu0 %v408
        %675 = vmatpush2.xpose.msra.mxu0 %v407
        %676 = vmatprep.subr.mxu0 %v406
        %677 = vmatpush2.xpose.msra.mxu0 %v405
        %678 = vmatprep.subr.mxu0 %v404
        %679 = vmatpush2.xpose.msra.mxu0 %v403
        %680 = vmatprep.subr.mxu0 %v402
        %681 = vmatpush2.xpose.msra.mxu0 %v401
        %682 = vmatprep.subr.mxu0 %v400
        %683 = vmatpush2.xpose.msra.mxu0 %v399
        %684 = vmatprep.subr.mxu0 %v398
        %685 = vmatpush2.xpose.msra.mxu0 %v397
        %686 = vmatprep.subr.mxu0 %v396
        %687 = vmatpush2.xpose.msra.mxu0 %v395
        %688 = vmatprep.subr.mxu0 %v394
        %689 = vmatpush2.xpose.msra.mxu0 %v393
        %690 = vmatprep.subr.mxu0 %v392
        %691 = vmatpush2.xpose.msra.mxu0 %v391
        %692 = vmatprep.subr.mxu0 %v390
        %693 = vmatpush2.xpose.msra.mxu0 %v389
        %694 = vmatprep.mubr.f32.mxu0 %v486
        %695 = vmatmul.mubr.f32.gmra.mxu0 %v228
        %v696 = vpop.f32.mrf.mxu0
        %v697 = vadd.f32 0.0, %v696
        %v698 = vpop.f32.mrf.mxu0
        %v699 = vadd.f32 0.0, %v698
        %700 = vdwg.mxu0
        %701 = vmatprep.subr.mxu0 %v452
        %702 = vmatpush1.xpose.msra.mxu0 %v451
        %703 = vmatprep.subr.mxu0 %v450
        %704 = vmatpush1.xpose.msra.mxu0 %v449
        %705 = vmatprep.subr.mxu0 %v448
        %706 = vmatpush1.xpose.msra.mxu0 %v447
        %707 = vmatprep.subr.mxu0 %v446
        %708 = vmatpush1.xpose.msra.mxu0 %v445
        %709 = vmatprep.subr.mxu0 %v444
        %710 = vmatpush1.xpose.msra.mxu0 %v443
        %711 = vmatprep.subr.mxu0 %v442
        %712 = vmatpush1.xpose.msra.mxu0 %v441
        %713 = vmatprep.subr.mxu0 %v440
        %714 = vmatpush1.xpose.msra.mxu0 %v439
        %715 = vmatprep.subr.mxu0 %v438
        %716 = vmatpush1.xpose.msra.mxu0 %v437
        %717 = vmatprep.subr.mxu0 %v436
        %718 = vmatpush1.xpose.msra.mxu0 %v435
        %719 = vmatprep.subr.mxu0 %v434
        %720 = vmatpush1.xpose.msra.mxu0 %v433
        %721 = vmatprep.subr.mxu0 %v432
        %722 = vmatpush1.xpose.msra.mxu0 %v431
        %723 = vmatprep.subr.mxu0 %v430
        %724 = vmatpush1.xpose.msra.mxu0 %v429
        %725 = vmatprep.subr.mxu0 %v428
        %726 = vmatpush1.xpose.msra.mxu0 %v427
        %727 = vmatprep.subr.mxu0 %v426
        %728 = vmatpush1.xpose.msra.mxu0 %v425
        %729 = vmatprep.subr.mxu0 %v424
        %730 = vmatpush1.xpose.msra.mxu0 %v423
        %731 = vmatprep.subr.mxu0 %v422
        %732 = vmatpush1.xpose.msra.mxu0 %v421
        %733 = vmatprep.subr.mxu0 %v484
        %734 = vmatpush2.xpose.msra.mxu0 %v483
        %735 = vmatprep.subr.mxu0 %v482
        %736 = vmatpush2.xpose.msra.mxu0 %v481
        %737 = vmatprep.subr.mxu0 %v480
        %738 = vmatpush2.xpose.msra.mxu0 %v479
        %739 = vmatprep.subr.mxu0 %v478
        %740 = vmatpush2.xpose.msra.mxu0 %v477
        %741 = vmatprep.subr.mxu0 %v476
        %742 = vmatpush2.xpose.msra.mxu0 %v475
        %743 = vmatprep.subr.mxu0 %v474
        %744 = vmatpush2.xpose.msra.mxu0 %v473
        %745 = vmatprep.subr.mxu0 %v472
        %746 = vmatpush2.xpose.msra.mxu0 %v471
        %747 = vmatprep.subr.mxu0 %v470
        %748 = vmatpush2.xpose.msra.mxu0 %v469
        %749 = vmatprep.subr.mxu0 %v468
        %750 = vmatpush2.xpose.msra.mxu0 %v467
        %751 = vmatprep.subr.mxu0 %v466
        %752 = vmatpush2.xpose.msra.mxu0 %v465
        %753 = vmatprep.subr.mxu0 %v464
        %754 = vmatpush2.xpose.msra.mxu0 %v463
        %755 = vmatprep.subr.mxu0 %v462
        %756 = vmatpush2.xpose.msra.mxu0 %v461
        %757 = vmatprep.subr.mxu0 %v460
        %758 = vmatpush2.xpose.msra.mxu0 %v459
        %759 = vmatprep.subr.mxu0 %v458
        %760 = vmatpush2.xpose.msra.mxu0 %v457
        %761 = vmatprep.subr.mxu0 %v456
        %762 = vmatpush2.xpose.msra.mxu0 %v455
        %763 = vmatprep.subr.mxu0 %v454
        %764 = vmatpush2.xpose.msra.mxu0 %v453
        %765 = vmatprep.mubr.f32.mxu0 %v486
        %766 = vmatmul.mubr.f32.gmra.mxu0 %v228
        %v767 = vpop.f32.mrf.mxu0
        %v768 = vadd.f32 0.0, %v767
        %v769 = vpop.f32.mrf.mxu0
        %v770 = vadd.f32 0.0, %v769
        %771 = vdwg.mxu0
        %v772 = vld [vmem:[%s2] sm:$0xff]
        %v773 = vld [vmem:[%s2 + $0x8] sm:$0xff]
        %v774 = vld [vmem:[%s2 + $0x10] sm:$0xff]
        %v775 = vld [vmem:[%s2 + $0x18] sm:$0xff]
        %v776 = vld [vmem:[%s2 + $0x20] sm:$0xff]
        %v777 = vld [vmem:[%s2 + $0x28] sm:$0xff]
        %v778 = vld [vmem:[%s2 + $0x30] sm:$0xff]
        %v779 = vld [vmem:[%s2 + $0x38] sm:$0xff]
        %v780 = vld [vmem:[%s2 + $0x40] sm:$0xff]
        %v781 = vld [vmem:[%s2 + $0x48] sm:$0x1f]
        %v782 = vld [vmem:[#allocation4] sm:$0xff]
        %v783 = vld [vmem:[#allocation4 + $0x8] sm:$0xff]
        %v784 = vld [vmem:[#allocation4 + $0x40] sm:$0xff]
        %v785 = vld [vmem:[#allocation4 + $0x48] sm:$0xff]
        %v786 = vld [vmem:[#allocation4 + $0x80] sm:$0xff]
        %v787 = vld [vmem:[#allocation4 + $0x88] sm:$0xff]
        %v788 = vld [vmem:[#allocation4 + $0xc0] sm:$0xff]
        %v789 = vld [vmem:[#allocation4 + $0xc8] sm:$0xff]
        %v790 = vld [vmem:[#allocation4 + $0x100] sm:$0xff]
        %v791 = vld [vmem:[#allocation4 + $0x108] sm:$0xff]
        %v792 = vld [vmem:[#allocation4 + $0x140] sm:$0xff]
        %v793 = vld [vmem:[#allocation4 + $0x148] sm:$0xff]
        %v794 = vld [vmem:[#allocation4 + $0x180] sm:$0xff]
        %v795 = vld [vmem:[#allocation4 + $0x188] sm:$0xff]
        %v796 = vld [vmem:[#allocation4 + $0x1c0] sm:$0xff]
        %v797 = vld [vmem:[#allocation4 + $0x1c8] sm:$0xff]
        %v798 = vld [vmem:[#allocation4 + $0x200] sm:$0xff]
        %v799 = vld [vmem:[#allocation4 + $0x208] sm:$0xff]
        %v800 = vld [vmem:[#allocation4 + $0x240] sm:$0x1f]
        %v801 = vld [vmem:[#allocation4 + $0x248] sm:$0x1f]
        %803 = vset.pattern.permute.xlu0 0
        %804 = vperm.xlu0 %803, %v772
        %v805 = vpop.permute.xlu0 %804
        %808 = vset.pattern.permute.xlu0 0
        %809 = vperm.xlu0 %808, %v773
        %v810 = vpop.permute.xlu0 %809
        %813 = vset.pattern.permute.xlu0 0
        %814 = vperm.xlu0 %813, %v774
        %v815 = vpop.permute.xlu0 %814
        %818 = vset.pattern.permute.xlu0 0
        %819 = vperm.xlu0 %818, %v775
        %v820 = vpop.permute.xlu0 %819
        %823 = vset.pattern.permute.xlu0 0
        %824 = vperm.xlu0 %823, %v776
        %v825 = vpop.permute.xlu0 %824
        %828 = vset.pattern.permute.xlu0 0
        %829 = vperm.xlu0 %828, %v777
        %v830 = vpop.permute.xlu0 %829
        %833 = vset.pattern.permute.xlu0 0
        %834 = vperm.xlu0 %833, %v778
        %v835 = vpop.permute.xlu0 %834
        %838 = vset.pattern.permute.xlu0 0
        %839 = vperm.xlu0 %838, %v779
        %v840 = vpop.permute.xlu0 %839
        %843 = vset.pattern.permute.xlu0 0
        %844 = vperm.xlu0 %843, %v780
        %v845 = vpop.permute.xlu0 %844
        %848 = vset.pattern.permute.xlu0 0
        %849 = vperm.xlu0 %848, %v781
        %v850 = vpop.permute.xlu0 %849
        %v852 = vlaneseq
        %v853 = vshrl.u32 %v852, 7
        %v854 = vsub.s32 0, %v853
        %v855 = vrot.slane %v555, %v854
        %v856 = vlaneseq
        %v857 = vshrl.u32 %v856, 7
        %v858 = vsub.s32 0, %v857
        %v859 = vrot.slane %v557, %v858
        %v860 = vmul.f32 %v805, %v855
        %v861 = vmul.f32 %v805, %v859
        %v862 = vmul.f32 %v810, %v855
        %v863 = vmul.f32 %v810, %v859
        %v864 = vmul.f32 %v815, %v855
        %v865 = vmul.f32 %v815, %v859
        %v866 = vmul.f32 %v820, %v855
        %v867 = vmul.f32 %v820, %v859
        %v868 = vmul.f32 %v825, %v855
        %v869 = vmul.f32 %v825, %v859
        %v870 = vmul.f32 %v830, %v855
        %v871 = vmul.f32 %v830, %v859
        %v872 = vmul.f32 %v835, %v855
        %v873 = vmul.f32 %v835, %v859
        %v874 = vmul.f32 %v840, %v855
        %v875 = vmul.f32 %v840, %v859
        %v876 = vmul.f32 %v845, %v855
        %v877 = vmul.f32 %v845, %v859
        %v878 = vmul.f32 %v850, %v855
        %v879 = vmul.f32 %v850, %v859
        %v880 = vadd.f32 %v782, %v860
        %v881 = vadd.f32 %v783, %v861
        %v882 = vadd.f32 %v784, %v862
        %v883 = vadd.f32 %v785, %v863
        %v884 = vadd.f32 %v786, %v864
        %v885 = vadd.f32 %v787, %v865
        %v886 = vadd.f32 %v788, %v866
        %v887 = vadd.f32 %v789, %v867
        %v888 = vadd.f32 %v790, %v868
        %v889 = vadd.f32 %v791, %v869
        %v890 = vadd.f32 %v792, %v870
        %v891 = vadd.f32 %v793, %v871
        %v892 = vadd.f32 %v794, %v872
        %v893 = vadd.f32 %v795, %v873
        %v894 = vadd.f32 %v796, %v874
        %v895 = vadd.f32 %v797, %v875
        %v896 = vadd.f32 %v798, %v876
        %v897 = vadd.f32 %v799, %v877
        %v898 = vadd.f32 %v800, %v878
        %v899 = vadd.f32 %v801, %v879
        %900 = vset.pattern.permute.xlu0 1
        %901 = vperm.xlu0 %900, %v772
        %v902 = vpop.permute.xlu0 %901
        %904 = vset.pattern.permute.xlu0 1
        %905 = vperm.xlu0 %904, %v773
        %v906 = vpop.permute.xlu0 %905
        %908 = vset.pattern.permute.xlu0 1
        %909 = vperm.xlu0 %908, %v774
        %v910 = vpop.permute.xlu0 %909
        %912 = vset.pattern.permute.xlu0 1
        %913 = vperm.xlu0 %912, %v775
        %v914 = vpop.permute.xlu0 %913
        %916 = vset.pattern.permute.xlu0 1
        %917 = vperm.xlu0 %916, %v776
        %v918 = vpop.permute.xlu0 %917
        %920 = vset.pattern.permute.xlu0 1
        %921 = vperm.xlu0 %920, %v777
        %v922 = vpop.permute.xlu0 %921
        %924 = vset.pattern.permute.xlu0 1
        %925 = vperm.xlu0 %924, %v778
        %v926 = vpop.permute.xlu0 %925
        %928 = vset.pattern.permute.xlu0 1
        %929 = vperm.xlu0 %928, %v779
        %v930 = vpop.permute.xlu0 %929
        %932 = vset.pattern.permute.xlu0 1
        %933 = vperm.xlu0 %932, %v780
        %v934 = vpop.permute.xlu0 %933
        %936 = vset.pattern.permute.xlu0 1
        %937 = vperm.xlu0 %936, %v781
        %v938 = vpop.permute.xlu0 %937
        %v940 = vlaneseq
        %v941 = vshrl.u32 %v940, 7
        %v942 = vsub.s32 1, %v941
        %v943 = vrot.slane %v555, %v942
        %v944 = vlaneseq
        %v945 = vshrl.u32 %v944, 7
        %v946 = vsub.s32 1, %v945
        %v947 = vrot.slane %v557, %v946
        %v948 = vmul.f32 %v902, %v943
        %v949 = vmul.f32 %v902, %v947
        %v950 = vmul.f32 %v906, %v943
        %v951 = vmul.f32 %v906, %v947
        %v952 = vmul.f32 %v910, %v943
        %v953 = vmul.f32 %v910, %v947
        %v954 = vmul.f32 %v914, %v943
        %v955 = vmul.f32 %v914, %v947
        %v956 = vmul.f32 %v918, %v943
        %v957 = vmul.f32 %v918, %v947
        %v958 = vmul.f32 %v922, %v943
        %v959 = vmul.f32 %v922, %v947
        %v960 = vmul.f32 %v926, %v943
        %v961 = vmul.f32 %v926, %v947
        %v962 = vmul.f32 %v930, %v943
        %v963 = vmul.f32 %v930, %v947
        %v964 = vmul.f32 %v934, %v943
        %v965 = vmul.f32 %v934, %v947
        %v966 = vmul.f32 %v938, %v943
        %v967 = vmul.f32 %v938, %v947
        %v968 = vadd.f32 %v880, %v948
        %v969 = vadd.f32 %v881, %v949
        %v970 = vadd.f32 %v882, %v950
        %v971 = vadd.f32 %v883, %v951
        %v972 = vadd.f32 %v884, %v952
        %v973 = vadd.f32 %v885, %v953
        %v974 = vadd.f32 %v886, %v954
        %v975 = vadd.f32 %v887, %v955
        %v976 = vadd.f32 %v888, %v956
        %v977 = vadd.f32 %v889, %v957
        %v978 = vadd.f32 %v890, %v958
        %v979 = vadd.f32 %v891, %v959
        %v980 = vadd.f32 %v892, %v960
        %v981 = vadd.f32 %v893, %v961
        %v982 = vadd.f32 %v894, %v962
        %v983 = vadd.f32 %v895, %v963
        %v984 = vadd.f32 %v896, %v964
        %v985 = vadd.f32 %v897, %v965
        %v986 = vadd.f32 %v898, %v966
        %v987 = vadd.f32 %v899, %v967
        %988 = vset.pattern.permute.xlu0 2
        %989 = vperm.xlu0 %988, %v772
        %v990 = vpop.permute.xlu0 %989
        %992 = vset.pattern.permute.xlu0 2
        %993 = vperm.xlu0 %992, %v773
        %v994 = vpop.permute.xlu0 %993
        %996 = vset.pattern.permute.xlu0 2
        %997 = vperm.xlu0 %996, %v774
        %v998 = vpop.permute.xlu0 %997
        %1000 = vset.pattern.permute.xlu0 2
        %1001 = vperm.xlu0 %1000, %v775
        %v1002 = vpop.permute.xlu0 %1001
        %1004 = vset.pattern.permute.xlu0 2
        %1005 = vperm.xlu0 %1004, %v776
        %v1006 = vpop.permute.xlu0 %1005
        %1008 = vset.pattern.permute.xlu0 2
        %1009 = vperm.xlu0 %1008, %v777
        %v1010 = vpop.permute.xlu0 %1009
        %1012 = vset.pattern.permute.xlu0 2
        %1013 = vperm.xlu0 %1012, %v778
        %v1014 = vpop.permute.xlu0 %1013
        %1016 = vset.pattern.permute.xlu0 2
        %1017 = vperm.xlu0 %1016, %v779
        %v1018 = vpop.permute.xlu0 %1017
        %1020 = vset.pattern.permute.xlu0 2
        %1021 = vperm.xlu0 %1020, %v780
        %v1022 = vpop.permute.xlu0 %1021
        %1024 = vset.pattern.permute.xlu0 2
        %1025 = vperm.xlu0 %1024, %v781
        %v1026 = vpop.permute.xlu0 %1025
        %v1028 = vlaneseq
        %v1029 = vshrl.u32 %v1028, 7
        %v1030 = vsub.s32 2, %v1029
        %v1031 = vrot.slane %v555, %v1030
        %v1032 = vlaneseq
        %v1033 = vshrl.u32 %v1032, 7
        %v1034 = vsub.s32 2, %v1033
        %v1035 = vrot.slane %v557, %v1034
        %v1036 = vmul.f32 %v990, %v1031
        %v1037 = vmul.f32 %v990, %v1035
        %v1038 = vmul.f32 %v994, %v1031
        %v1039 = vmul.f32 %v994, %v1035
        %v1040 = vmul.f32 %v998, %v1031
        %v1041 = vmul.f32 %v998, %v1035
        %v1042 = vmul.f32 %v1002, %v1031
        %v1043 = vmul.f32 %v1002, %v1035
        %v1044 = vmul.f32 %v1006, %v1031
        %v1045 = vmul.f32 %v1006, %v1035
        %v1046 = vmul.f32 %v1010, %v1031
        %v1047 = vmul.f32 %v1010, %v1035
        %v1048 = vmul.f32 %v1014, %v1031
        %v1049 = vmul.f32 %v1014, %v1035
        %v1050 = vmul.f32 %v1018, %v1031
        %v1051 = vmul.f32 %v1018, %v1035
        %v1052 = vmul.f32 %v1022, %v1031
        %v1053 = vmul.f32 %v1022, %v1035
        %v1054 = vmul.f32 %v1026, %v1031
        %v1055 = vmul.f32 %v1026, %v1035
        %v1056 = vadd.f32 %v968, %v1036
        %v1057 = vadd.f32 %v969, %v1037
        %v1058 = vadd.f32 %v970, %v1038
        %v1059 = vadd.f32 %v971, %v1039
        %v1060 = vadd.f32 %v972, %v1040
        %v1061 = vadd.f32 %v973, %v1041
        %v1062 = vadd.f32 %v974, %v1042
        %v1063 = vadd.f32 %v975, %v1043
        %v1064 = vadd.f32 %v976, %v1044
        %v1065 = vadd.f32 %v977, %v1045
        %v1066 = vadd.f32 %v978, %v1046
        %v1067 = vadd.f32 %v979, %v1047
        %v1068 = vadd.f32 %v980, %v1048
        %v1069 = vadd.f32 %v981, %v1049
        %v1070 = vadd.f32 %v982, %v1050
        %v1071 = vadd.f32 %v983, %v1051
        %v1072 = vadd.f32 %v984, %v1052
        %v1073 = vadd.f32 %v985, %v1053
        %v1074 = vadd.f32 %v986, %v1054
        %v1075 = vadd.f32 %v987, %v1055
        %1076 = vset.pattern.permute.xlu0 3
        %1077 = vperm.xlu0 %1076, %v772
        %v1078 = vpop.permute.xlu0 %1077
        %1080 = vset.pattern.permute.xlu0 3
        %1081 = vperm.xlu0 %1080, %v773
        %v1082 = vpop.permute.xlu0 %1081
        %1084 = vset.pattern.permute.xlu0 3
        %1085 = vperm.xlu0 %1084, %v774
        %v1086 = vpop.permute.xlu0 %1085
        %1088 = vset.pattern.permute.xlu0 3
        %1089 = vperm.xlu0 %1088, %v775
        %v1090 = vpop.permute.xlu0 %1089
        %1092 = vset.pattern.permute.xlu0 3
        %1093 = vperm.xlu0 %1092, %v776
        %v1094 = vpop.permute.xlu0 %1093
        %1096 = vset.pattern.permute.xlu0 3
        %1097 = vperm.xlu0 %1096, %v777
        %v1098 = vpop.permute.xlu0 %1097
        %1100 = vset.pattern.permute.xlu0 3
        %1101 = vperm.xlu0 %1100, %v778
        %v1102 = vpop.permute.xlu0 %1101
        %1104 = vset.pattern.permute.xlu0 3
        %1105 = vperm.xlu0 %1104, %v779
        %v1106 = vpop.permute.xlu0 %1105
        %1108 = vset.pattern.permute.xlu0 3
        %1109 = vperm.xlu0 %1108, %v780
        %v1110 = vpop.permute.xlu0 %1109
        %1112 = vset.pattern.permute.xlu0 3
        %1113 = vperm.xlu0 %1112, %v781
        %v1114 = vpop.permute.xlu0 %1113
        %v1116 = vlaneseq
        %v1117 = vshrl.u32 %v1116, 7
        %v1118 = vsub.s32 3, %v1117
        %v1119 = vrot.slane %v555, %v1118
        %v1120 = vlaneseq
        %v1121 = vshrl.u32 %v1120, 7
        %v1122 = vsub.s32 3, %v1121
        %v1123 = vrot.slane %v557, %v1122
        %v1124 = vmul.f32 %v1078, %v1119
        %v1125 = vmul.f32 %v1078, %v1123
        %v1126 = vmul.f32 %v1082, %v1119
        %v1127 = vmul.f32 %v1082, %v1123
        %v1128 = vmul.f32 %v1086, %v1119
        %v1129 = vmul.f32 %v1086, %v1123
        %v1130 = vmul.f32 %v1090, %v1119
        %v1131 = vmul.f32 %v1090, %v1123
        %v1132 = vmul.f32 %v1094, %v1119
        %v1133 = vmul.f32 %v1094, %v1123
        %v1134 = vmul.f32 %v1098, %v1119
        %v1135 = vmul.f32 %v1098, %v1123
        %v1136 = vmul.f32 %v1102, %v1119
        %v1137 = vmul.f32 %v1102, %v1123
        %v1138 = vmul.f32 %v1106, %v1119
        %v1139 = vmul.f32 %v1106, %v1123
        %v1140 = vmul.f32 %v1110, %v1119
        %v1141 = vmul.f32 %v1110, %v1123
        %v1142 = vmul.f32 %v1114, %v1119
        %v1143 = vmul.f32 %v1114, %v1123
        %v1144 = vadd.f32 %v1056, %v1124
        %v1145 = vadd.f32 %v1057, %v1125
        %v1146 = vadd.f32 %v1058, %v1126
        %v1147 = vadd.f32 %v1059, %v1127
        %v1148 = vadd.f32 %v1060, %v1128
        %v1149 = vadd.f32 %v1061, %v1129
        %v1150 = vadd.f32 %v1062, %v1130
        %v1151 = vadd.f32 %v1063, %v1131
        %v1152 = vadd.f32 %v1064, %v1132
        %v1153 = vadd.f32 %v1065, %v1133
        %v1154 = vadd.f32 %v1066, %v1134
        %v1155 = vadd.f32 %v1067, %v1135
        %v1156 = vadd.f32 %v1068, %v1136
        %v1157 = vadd.f32 %v1069, %v1137
        %v1158 = vadd.f32 %v1070, %v1138
        %v1159 = vadd.f32 %v1071, %v1139
        %v1160 = vadd.f32 %v1072, %v1140
        %v1161 = vadd.f32 %v1073, %v1141
        %v1162 = vadd.f32 %v1074, %v1142
        %v1163 = vadd.f32 %v1075, %v1143
        %1164 = vst [vmem:[%s227] sm:$0xff] %v1144
        %1165 = vst [vmem:[%s227 + $0x8] sm:$0xff] %v1145
        %1166 = vst [vmem:[%s227 + $0x40] sm:$0xff] %v1146
        %1167 = vst [vmem:[%s227 + $0x48] sm:$0xff] %v1147
        %1168 = vst [vmem:[%s227 + $0x80] sm:$0xff] %v1148
        %1169 = vst [vmem:[%s227 + $0x88] sm:$0xff] %v1149
        %1170 = vst [vmem:[%s227 + $0xc0] sm:$0xff] %v1150
        %1171 = vst [vmem:[%s227 + $0xc8] sm:$0xff] %v1151
        %1172 = vst [vmem:[%s227 + $0x100] sm:$0xff] %v1152
        %1173 = vst [vmem:[%s227 + $0x108] sm:$0xff] %v1153
        %1174 = vst [vmem:[%s227 + $0x140] sm:$0xff] %v1154
        %1175 = vst [vmem:[%s227 + $0x148] sm:$0xff] %v1155
        %1176 = vst [vmem:[%s227 + $0x180] sm:$0xff] %v1156
        %1177 = vst [vmem:[%s227 + $0x188] sm:$0xff] %v1157
        %1178 = vst [vmem:[%s227 + $0x1c0] sm:$0xff] %v1158
        %1179 = vst [vmem:[%s227 + $0x1c8] sm:$0xff] %v1159
        %1180 = vst [vmem:[%s227 + $0x200] sm:$0xff] %v1160
        %1181 = vst [vmem:[%s227 + $0x208] sm:$0xff] %v1161
        %1182 = vst [vmem:[%s227 + $0x240] sm:$0x1f] %v1162
        %1183 = vst [vmem:[%s227 + $0x248] sm:$0x1f] %v1163
        %v1184 = vld [vmem:[#allocation4 + $0x10] sm:$0xff]
        %v1185 = vld [vmem:[#allocation4 + $0x18] sm:$0xff]
        %v1186 = vld [vmem:[#allocation4 + $0x50] sm:$0xff]
        %v1187 = vld [vmem:[#allocation4 + $0x58] sm:$0xff]
        %v1188 = vld [vmem:[#allocation4 + $0x90] sm:$0xff]
        %v1189 = vld [vmem:[#allocation4 + $0x98] sm:$0xff]
        %v1190 = vld [vmem:[#allocation4 + $0xd0] sm:$0xff]
        %v1191 = vld [vmem:[#allocation4 + $0xd8] sm:$0xff]
        %v1192 = vld [vmem:[#allocation4 + $0x110] sm:$0xff]
        %v1193 = vld [vmem:[#allocation4 + $0x118] sm:$0xff]
        %v1194 = vld [vmem:[#allocation4 + $0x150] sm:$0xff]
        %v1195 = vld [vmem:[#allocation4 + $0x158] sm:$0xff]
        %v1196 = vld [vmem:[#allocation4 + $0x190] sm:$0xff]
        %v1197 = vld [vmem:[#allocation4 + $0x198] sm:$0xff]
        %v1198 = vld [vmem:[#allocation4 + $0x1d0] sm:$0xff]
        %v1199 = vld [vmem:[#allocation4 + $0x1d8] sm:$0xff]
        %v1200 = vld [vmem:[#allocation4 + $0x210] sm:$0xff]
        %v1201 = vld [vmem:[#allocation4 + $0x218] sm:$0xff]
        %v1202 = vld [vmem:[#allocation4 + $0x250] sm:$0x1f]
        %v1203 = vld [vmem:[#allocation4 + $0x258] sm:$0x1f]
        %v1204 = vlaneseq
        %v1205 = vshrl.u32 %v1204, 7
        %v1206 = vsub.s32 0, %v1205
        %v1207 = vrot.slane %v626, %v1206
        %v1208 = vlaneseq
        %v1209 = vshrl.u32 %v1208, 7
        %v1210 = vsub.s32 0, %v1209
        %v1211 = vrot.slane %v628, %v1210
        %v1212 = vmul.f32 %v805, %v1207
        %v1213 = vmul.f32 %v805, %v1211
        %v1214 = vmul.f32 %v810, %v1207
        %v1215 = vmul.f32 %v810, %v1211
        %v1216 = vmul.f32 %v815, %v1207
        %v1217 = vmul.f32 %v815, %v1211
        %v1218 = vmul.f32 %v820, %v1207
        %v1219 = vmul.f32 %v820, %v1211
        %v1220 = vmul.f32 %v825, %v1207
        %v1221 = vmul.f32 %v825, %v1211
        %v1222 = vmul.f32 %v830, %v1207
        %v1223 = vmul.f32 %v830, %v1211
        %v1224 = vmul.f32 %v835, %v1207
        %v1225 = vmul.f32 %v835, %v1211
        %v1226 = vmul.f32 %v840, %v1207
        %v1227 = vmul.f32 %v840, %v1211
        %v1228 = vmul.f32 %v845, %v1207
        %v1229 = vmul.f32 %v845, %v1211
        %v1230 = vmul.f32 %v850, %v1207
        %v1231 = vmul.f32 %v850, %v1211
        %v1232 = vadd.f32 %v1184, %v1212
        %v1233 = vadd.f32 %v1185, %v1213
        %v1234 = vadd.f32 %v1186, %v1214
        %v1235 = vadd.f32 %v1187, %v1215
        %v1236 = vadd.f32 %v1188, %v1216
        %v1237 = vadd.f32 %v1189, %v1217
        %v1238 = vadd.f32 %v1190, %v1218
        %v1239 = vadd.f32 %v1191, %v1219
        %v1240 = vadd.f32 %v1192, %v1220
        %v1241 = vadd.f32 %v1193, %v1221
        %v1242 = vadd.f32 %v1194, %v1222
        %v1243 = vadd.f32 %v1195, %v1223
        %v1244 = vadd.f32 %v1196, %v1224
        %v1245 = vadd.f32 %v1197, %v1225
        %v1246 = vadd.f32 %v1198, %v1226
        %v1247 = vadd.f32 %v1199, %v1227
        %v1248 = vadd.f32 %v1200, %v1228
        %v1249 = vadd.f32 %v1201, %v1229
        %v1250 = vadd.f32 %v1202, %v1230
        %v1251 = vadd.f32 %v1203, %v1231
        %v1252 = vlaneseq
        %v1253 = vshrl.u32 %v1252, 7
        %v1254 = vsub.s32 1, %v1253
        %v1255 = vrot.slane %v626, %v1254
        %v1256 = vlaneseq
        %v1257 = vshrl.u32 %v1256, 7
        %v1258 = vsub.s32 1, %v1257
        %v1259 = vrot.slane %v628, %v1258
        %v1260 = vmul.f32 %v902, %v1255
        %v1261 = vmul.f32 %v902, %v1259
        %v1262 = vmul.f32 %v906, %v1255
        %v1263 = vmul.f32 %v906, %v1259
        %v1264 = vmul.f32 %v910, %v1255
        %v1265 = vmul.f32 %v910, %v1259
        %v1266 = vmul.f32 %v914, %v1255
        %v1267 = vmul.f32 %v914, %v1259
        %v1268 = vmul.f32 %v918, %v1255
        %v1269 = vmul.f32 %v918, %v1259
        %v1270 = vmul.f32 %v922, %v1255
        %v1271 = vmul.f32 %v922, %v1259
        %v1272 = vmul.f32 %v926, %v1255
        %v1273 = vmul.f32 %v926, %v1259
        %v1274 = vmul.f32 %v930, %v1255
        %v1275 = vmul.f32 %v930, %v1259
        %v1276 = vmul.f32 %v934, %v1255
        %v1277 = vmul.f32 %v934, %v1259
        %v1278 = vmul.f32 %v938, %v1255
        %v1279 = vmul.f32 %v938, %v1259
        %v1280 = vadd.f32 %v1232, %v1260
        %v1281 = vadd.f32 %v1233, %v1261
        %v1282 = vadd.f32 %v1234, %v1262
        %v1283 = vadd.f32 %v1235, %v1263
        %v1284 = vadd.f32 %v1236, %v1264
        %v1285 = vadd.f32 %v1237, %v1265
        %v1286 = vadd.f32 %v1238, %v1266
        %v1287 = vadd.f32 %v1239, %v1267
        %v1288 = vadd.f32 %v1240, %v1268
        %v1289 = vadd.f32 %v1241, %v1269
        %v1290 = vadd.f32 %v1242, %v1270
        %v1291 = vadd.f32 %v1243, %v1271
        %v1292 = vadd.f32 %v1244, %v1272
        %v1293 = vadd.f32 %v1245, %v1273
        %v1294 = vadd.f32 %v1246, %v1274
        %v1295 = vadd.f32 %v1247, %v1275
        %v1296 = vadd.f32 %v1248, %v1276
        %v1297 = vadd.f32 %v1249, %v1277
        %v1298 = vadd.f32 %v1250, %v1278
        %v1299 = vadd.f32 %v1251, %v1279
        %v1300 = vlaneseq
        %v1301 = vshrl.u32 %v1300, 7
        %v1302 = vsub.s32 2, %v1301
        %v1303 = vrot.slane %v626, %v1302
        %v1304 = vlaneseq
        %v1305 = vshrl.u32 %v1304, 7
        %v1306 = vsub.s32 2, %v1305
        %v1307 = vrot.slane %v628, %v1306
        %v1308 = vmul.f32 %v990, %v1303
        %v1309 = vmul.f32 %v990, %v1307
        %v1310 = vmul.f32 %v994, %v1303
        %v1311 = vmul.f32 %v994, %v1307
        %v1312 = vmul.f32 %v998, %v1303
        %v1313 = vmul.f32 %v998, %v1307
        %v1314 = vmul.f32 %v1002, %v1303
        %v1315 = vmul.f32 %v1002, %v1307
        %v1316 = vmul.f32 %v1006, %v1303
        %v1317 = vmul.f32 %v1006, %v1307
        %v1318 = vmul.f32 %v1010, %v1303
        %v1319 = vmul.f32 %v1010, %v1307
        %v1320 = vmul.f32 %v1014, %v1303
        %v1321 = vmul.f32 %v1014, %v1307
        %v1322 = vmul.f32 %v1018, %v1303
        %v1323 = vmul.f32 %v1018, %v1307
        %v1324 = vmul.f32 %v1022, %v1303
        %v1325 = vmul.f32 %v1022, %v1307
        %v1326 = vmul.f32 %v1026, %v1303
        %v1327 = vmul.f32 %v1026, %v1307
        %v1328 = vadd.f32 %v1280, %v1308
        %v1329 = vadd.f32 %v1281, %v1309
        %v1330 = vadd.f32 %v1282, %v1310
        %v1331 = vadd.f32 %v1283, %v1311
        %v1332 = vadd.f32 %v1284, %v1312
        %v1333 = vadd.f32 %v1285, %v1313
        %v1334 = vadd.f32 %v1286, %v1314
        %v1335 = vadd.f32 %v1287, %v1315
        %v1336 = vadd.f32 %v1288, %v1316
        %v1337 = vadd.f32 %v1289, %v1317
        %v1338 = vadd.f32 %v1290, %v1318
        %v1339 = vadd.f32 %v1291, %v1319
        %v1340 = vadd.f32 %v1292, %v1320
        %v1341 = vadd.f32 %v1293, %v1321
        %v1342 = vadd.f32 %v1294, %v1322
        %v1343 = vadd.f32 %v1295, %v1323
        %v1344 = vadd.f32 %v1296, %v1324
        %v1345 = vadd.f32 %v1297, %v1325
        %v1346 = vadd.f32 %v1298, %v1326
        %v1347 = vadd.f32 %v1299, %v1327
        %v1348 = vlaneseq
        %v1349 = vshrl.u32 %v1348, 7
        %v1350 = vsub.s32 3, %v1349
        %v1351 = vrot.slane %v626, %v1350
        %v1352 = vlaneseq
        %v1353 = vshrl.u32 %v1352, 7
        %v1354 = vsub.s32 3, %v1353
        %v1355 = vrot.slane %v628, %v1354
        %v1356 = vmul.f32 %v1078, %v1351
        %v1357 = vmul.f32 %v1078, %v1355
        %v1358 = vmul.f32 %v1082, %v1351
        %v1359 = vmul.f32 %v1082, %v1355
        %v1360 = vmul.f32 %v1086, %v1351
        %v1361 = vmul.f32 %v1086, %v1355
        %v1362 = vmul.f32 %v1090, %v1351
        %v1363 = vmul.f32 %v1090, %v1355
        %v1364 = vmul.f32 %v1094, %v1351
        %v1365 = vmul.f32 %v1094, %v1355
        %v1366 = vmul.f32 %v1098, %v1351
        %v1367 = vmul.f32 %v1098, %v1355
        %v1368 = vmul.f32 %v1102, %v1351
        %v1369 = vmul.f32 %v1102, %v1355
        %v1370 = vmul.f32 %v1106, %v1351
        %v1371 = vmul.f32 %v1106, %v1355
        %v1372 = vmul.f32 %v1110, %v1351
        %v1373 = vmul.f32 %v1110, %v1355
        %v1374 = vmul.f32 %v1114, %v1351
        %v1375 = vmul.f32 %v1114, %v1355
        %v1376 = vadd.f32 %v1328, %v1356
        %v1377 = vadd.f32 %v1329, %v1357
        %v1378 = vadd.f32 %v1330, %v1358
        %v1379 = vadd.f32 %v1331, %v1359
        %v1380 = vadd.f32 %v1332, %v1360
        %v1381 = vadd.f32 %v1333, %v1361
        %v1382 = vadd.f32 %v1334, %v1362
        %v1383 = vadd.f32 %v1335, %v1363
        %v1384 = vadd.f32 %v1336, %v1364
        %v1385 = vadd.f32 %v1337, %v1365
        %v1386 = vadd.f32 %v1338, %v1366
        %v1387 = vadd.f32 %v1339, %v1367
        %v1388 = vadd.f32 %v1340, %v1368
        %v1389 = vadd.f32 %v1341, %v1369
        %v1390 = vadd.f32 %v1342, %v1370
        %v1391 = vadd.f32 %v1343, %v1371
        %v1392 = vadd.f32 %v1344, %v1372
        %v1393 = vadd.f32 %v1345, %v1373
        %v1394 = vadd.f32 %v1346, %v1374
        %v1395 = vadd.f32 %v1347, %v1375
        %1396 = vst [vmem:[%s227 + $0x10] sm:$0xff] %v1376
        %1397 = vst [vmem:[%s227 + $0x18] sm:$0xff] %v1377
        %1398 = vst [vmem:[%s227 + $0x50] sm:$0xff] %v1378
        %1399 = vst [vmem:[%s227 + $0x58] sm:$0xff] %v1379
        %1400 = vst [vmem:[%s227 + $0x90] sm:$0xff] %v1380
        %1401 = vst [vmem:[%s227 + $0x98] sm:$0xff] %v1381
        %1402 = vst [vmem:[%s227 + $0xd0] sm:$0xff] %v1382
        %1403 = vst [vmem:[%s227 + $0xd8] sm:$0xff] %v1383
        %1404 = vst [vmem:[%s227 + $0x110] sm:$0xff] %v1384
        %1405 = vst [vmem:[%s227 + $0x118] sm:$0xff] %v1385
        %1406 = vst [vmem:[%s227 + $0x150] sm:$0xff] %v1386
        %1407 = vst [vmem:[%s227 + $0x158] sm:$0xff] %v1387
        %1408 = vst [vmem:[%s227 + $0x190] sm:$0xff] %v1388
        %1409 = vst [vmem:[%s227 + $0x198] sm:$0xff] %v1389
        %1410 = vst [vmem:[%s227 + $0x1d0] sm:$0xff] %v1390
        %1411 = vst [vmem:[%s227 + $0x1d8] sm:$0xff] %v1391
        %1412 = vst [vmem:[%s227 + $0x210] sm:$0xff] %v1392
        %1413 = vst [vmem:[%s227 + $0x218] sm:$0xff] %v1393
        %1414 = vst [vmem:[%s227 + $0x250] sm:$0x1f] %v1394
        %1415 = vst [vmem:[%s227 + $0x258] sm:$0x1f] %v1395
        %v1416 = vld [vmem:[#allocation4 + $0x20] sm:$0xff]
        %v1417 = vld [vmem:[#allocation4 + $0x28] sm:$0xff]
        %v1418 = vld [vmem:[#allocation4 + $0x60] sm:$0xff]
        %v1419 = vld [vmem:[#allocation4 + $0x68] sm:$0xff]
        %v1420 = vld [vmem:[#allocation4 + $0xa0] sm:$0xff]
        %v1421 = vld [vmem:[#allocation4 + $0xa8] sm:$0xff]
        %v1422 = vld [vmem:[#allocation4 + $0xe0] sm:$0xff]
        %v1423 = vld [vmem:[#allocation4 + $0xe8] sm:$0xff]
        %v1424 = vld [vmem:[#allocation4 + $0x120] sm:$0xff]
        %v1425 = vld [vmem:[#allocation4 + $0x128] sm:$0xff]
        %v1426 = vld [vmem:[#allocation4 + $0x160] sm:$0xff]
        %v1427 = vld [vmem:[#allocation4 + $0x168] sm:$0xff]
        %v1428 = vld [vmem:[#allocation4 + $0x1a0] sm:$0xff]
        %v1429 = vld [vmem:[#allocation4 + $0x1a8] sm:$0xff]
        %v1430 = vld [vmem:[#allocation4 + $0x1e0] sm:$0xff]
        %v1431 = vld [vmem:[#allocation4 + $0x1e8] sm:$0xff]
        %v1432 = vld [vmem:[#allocation4 + $0x220] sm:$0xff]
        %v1433 = vld [vmem:[#allocation4 + $0x228] sm:$0xff]
        %v1434 = vld [vmem:[#allocation4 + $0x260] sm:$0x1f]
        %v1435 = vld [vmem:[#allocation4 + $0x268] sm:$0x1f]
        %v1436 = vlaneseq
        %v1437 = vshrl.u32 %v1436, 7
        %v1438 = vsub.s32 0, %v1437
        %v1439 = vrot.slane %v697, %v1438
        %v1440 = vlaneseq
        %v1441 = vshrl.u32 %v1440, 7
        %v1442 = vsub.s32 0, %v1441
        %v1443 = vrot.slane %v699, %v1442
        %v1444 = vmul.f32 %v805, %v1439
        %v1445 = vmul.f32 %v805, %v1443
        %v1446 = vmul.f32 %v810, %v1439
        %v1447 = vmul.f32 %v810, %v1443
        %v1448 = vmul.f32 %v815, %v1439
        %v1449 = vmul.f32 %v815, %v1443
        %v1450 = vmul.f32 %v820, %v1439
        %v1451 = vmul.f32 %v820, %v1443
        %v1452 = vmul.f32 %v825, %v1439
        %v1453 = vmul.f32 %v825, %v1443
        %v1454 = vmul.f32 %v830, %v1439
        %v1455 = vmul.f32 %v830, %v1443
        %v1456 = vmul.f32 %v835, %v1439
        %v1457 = vmul.f32 %v835, %v1443
        %v1458 = vmul.f32 %v840, %v1439
        %v1459 = vmul.f32 %v840, %v1443
        %v1460 = vmul.f32 %v845, %v1439
        %v1461 = vmul.f32 %v845, %v1443
        %v1462 = vmul.f32 %v850, %v1439
        %v1463 = vmul.f32 %v850, %v1443
        %v1464 = vadd.f32 %v1416, %v1444
        %v1465 = vadd.f32 %v1417, %v1445
        %v1466 = vadd.f32 %v1418, %v1446
        %v1467 = vadd.f32 %v1419, %v1447
        %v1468 = vadd.f32 %v1420, %v1448
        %v1469 = vadd.f32 %v1421, %v1449
        %v1470 = vadd.f32 %v1422, %v1450
        %v1471 = vadd.f32 %v1423, %v1451
        %v1472 = vadd.f32 %v1424, %v1452
        %v1473 = vadd.f32 %v1425, %v1453
        %v1474 = vadd.f32 %v1426, %v1454
        %v1475 = vadd.f32 %v1427, %v1455
        %v1476 = vadd.f32 %v1428, %v1456
        %v1477 = vadd.f32 %v1429, %v1457
        %v1478 = vadd.f32 %v1430, %v1458
        %v1479 = vadd.f32 %v1431, %v1459
        %v1480 = vadd.f32 %v1432, %v1460
        %v1481 = vadd.f32 %v1433, %v1461
        %v1482 = vadd.f32 %v1434, %v1462
        %v1483 = vadd.f32 %v1435, %v1463
        %v1484 = vlaneseq
        %v1485 = vshrl.u32 %v1484, 7
        %v1486 = vsub.s32 1, %v1485
        %v1487 = vrot.slane %v697, %v1486
        %v1488 = vlaneseq
        %v1489 = vshrl.u32 %v1488, 7
        %v1490 = vsub.s32 1, %v1489
        %v1491 = vrot.slane %v699, %v1490
        %v1492 = vmul.f32 %v902, %v1487
        %v1493 = vmul.f32 %v902, %v1491
        %v1494 = vmul.f32 %v906, %v1487
        %v1495 = vmul.f32 %v906, %v1491
        %v1496 = vmul.f32 %v910, %v1487
        %v1497 = vmul.f32 %v910, %v1491
        %v1498 = vmul.f32 %v914, %v1487
        %v1499 = vmul.f32 %v914, %v1491
        %v1500 = vmul.f32 %v918, %v1487
        %v1501 = vmul.f32 %v918, %v1491
        %v1502 = vmul.f32 %v922, %v1487
        %v1503 = vmul.f32 %v922, %v1491
        %v1504 = vmul.f32 %v926, %v1487
        %v1505 = vmul.f32 %v926, %v1491
        %v1506 = vmul.f32 %v930, %v1487
        %v1507 = vmul.f32 %v930, %v1491
        %v1508 = vmul.f32 %v934, %v1487
        %v1509 = vmul.f32 %v934, %v1491
        %v1510 = vmul.f32 %v938, %v1487
        %v1511 = vmul.f32 %v938, %v1491
        %v1512 = vadd.f32 %v1464, %v1492
        %v1513 = vadd.f32 %v1465, %v1493
        %v1514 = vadd.f32 %v1466, %v1494
        %v1515 = vadd.f32 %v1467, %v1495
        %v1516 = vadd.f32 %v1468, %v1496
        %v1517 = vadd.f32 %v1469, %v1497
        %v1518 = vadd.f32 %v1470, %v1498
        %v1519 = vadd.f32 %v1471, %v1499
        %v1520 = vadd.f32 %v1472, %v1500
        %v1521 = vadd.f32 %v1473, %v1501
        %v1522 = vadd.f32 %v1474, %v1502
        %v1523 = vadd.f32 %v1475, %v1503
        %v1524 = vadd.f32 %v1476, %v1504
        %v1525 = vadd.f32 %v1477, %v1505
        %v1526 = vadd.f32 %v1478, %v1506
        %v1527 = vadd.f32 %v1479, %v1507
        %v1528 = vadd.f32 %v1480, %v1508
        %v1529 = vadd.f32 %v1481, %v1509
        %v1530 = vadd.f32 %v1482, %v1510
        %v1531 = vadd.f32 %v1483, %v1511
        %v1532 = vlaneseq
        %v1533 = vshrl.u32 %v1532, 7
        %v1534 = vsub.s32 2, %v1533
        %v1535 = vrot.slane %v697, %v1534
        %v1536 = vlaneseq
        %v1537 = vshrl.u32 %v1536, 7
        %v1538 = vsub.s32 2, %v1537
        %v1539 = vrot.slane %v699, %v1538
        %v1540 = vmul.f32 %v990, %v1535
        %v1541 = vmul.f32 %v990, %v1539
        %v1542 = vmul.f32 %v994, %v1535
        %v1543 = vmul.f32 %v994, %v1539
        %v1544 = vmul.f32 %v998, %v1535
        %v1545 = vmul.f32 %v998, %v1539
        %v1546 = vmul.f32 %v1002, %v1535
        %v1547 = vmul.f32 %v1002, %v1539
        %v1548 = vmul.f32 %v1006, %v1535
        %v1549 = vmul.f32 %v1006, %v1539
        %v1550 = vmul.f32 %v1010, %v1535
        %v1551 = vmul.f32 %v1010, %v1539
        %v1552 = vmul.f32 %v1014, %v1535
        %v1553 = vmul.f32 %v1014, %v1539
        %v1554 = vmul.f32 %v1018, %v1535
        %v1555 = vmul.f32 %v1018, %v1539
        %v1556 = vmul.f32 %v1022, %v1535
        %v1557 = vmul.f32 %v1022, %v1539
        %v1558 = vmul.f32 %v1026, %v1535
        %v1559 = vmul.f32 %v1026, %v1539
        %v1560 = vadd.f32 %v1512, %v1540
        %v1561 = vadd.f32 %v1513, %v1541
        %v1562 = vadd.f32 %v1514, %v1542
        %v1563 = vadd.f32 %v1515, %v1543
        %v1564 = vadd.f32 %v1516, %v1544
        %v1565 = vadd.f32 %v1517, %v1545
        %v1566 = vadd.f32 %v1518, %v1546
        %v1567 = vadd.f32 %v1519, %v1547
        %v1568 = vadd.f32 %v1520, %v1548
        %v1569 = vadd.f32 %v1521, %v1549
        %v1570 = vadd.f32 %v1522, %v1550
        %v1571 = vadd.f32 %v1523, %v1551
        %v1572 = vadd.f32 %v1524, %v1552
        %v1573 = vadd.f32 %v1525, %v1553
        %v1574 = vadd.f32 %v1526, %v1554
        %v1575 = vadd.f32 %v1527, %v1555
        %v1576 = vadd.f32 %v1528, %v1556
        %v1577 = vadd.f32 %v1529, %v1557
        %v1578 = vadd.f32 %v1530, %v1558
        %v1579 = vadd.f32 %v1531, %v1559
        %v1580 = vlaneseq
        %v1581 = vshrl.u32 %v1580, 7
        %v1582 = vsub.s32 3, %v1581
        %v1583 = vrot.slane %v697, %v1582
        %v1584 = vlaneseq
        %v1585 = vshrl.u32 %v1584, 7
        %v1586 = vsub.s32 3, %v1585
        %v1587 = vrot.slane %v699, %v1586
        %v1588 = vmul.f32 %v1078, %v1583
        %v1589 = vmul.f32 %v1078, %v1587
        %v1590 = vmul.f32 %v1082, %v1583
        %v1591 = vmul.f32 %v1082, %v1587
        %v1592 = vmul.f32 %v1086, %v1583
        %v1593 = vmul.f32 %v1086, %v1587
        %v1594 = vmul.f32 %v1090, %v1583
        %v1595 = vmul.f32 %v1090, %v1587
        %v1596 = vmul.f32 %v1094, %v1583
        %v1597 = vmul.f32 %v1094, %v1587
        %v1598 = vmul.f32 %v1098, %v1583
        %v1599 = vmul.f32 %v1098, %v1587
        %v1600 = vmul.f32 %v1102, %v1583
        %v1601 = vmul.f32 %v1102, %v1587
        %v1602 = vmul.f32 %v1106, %v1583
        %v1603 = vmul.f32 %v1106, %v1587
        %v1604 = vmul.f32 %v1110, %v1583
        %v1605 = vmul.f32 %v1110, %v1587
        %v1606 = vmul.f32 %v1114, %v1583
        %v1607 = vmul.f32 %v1114, %v1587
        %v1608 = vadd.f32 %v1560, %v1588
        %v1609 = vadd.f32 %v1561, %v1589
        %v1610 = vadd.f32 %v1562, %v1590
        %v1611 = vadd.f32 %v1563, %v1591
        %v1612 = vadd.f32 %v1564, %v1592
        %v1613 = vadd.f32 %v1565, %v1593
        %v1614 = vadd.f32 %v1566, %v1594
        %v1615 = vadd.f32 %v1567, %v1595
        %v1616 = vadd.f32 %v1568, %v1596
        %v1617 = vadd.f32 %v1569, %v1597
        %v1618 = vadd.f32 %v1570, %v1598
        %v1619 = vadd.f32 %v1571, %v1599
        %v1620 = vadd.f32 %v1572, %v1600
        %v1621 = vadd.f32 %v1573, %v1601
        %v1622 = vadd.f32 %v1574, %v1602
        %v1623 = vadd.f32 %v1575, %v1603
        %v1624 = vadd.f32 %v1576, %v1604
        %v1625 = vadd.f32 %v1577, %v1605
        %v1626 = vadd.f32 %v1578, %v1606
        %v1627 = vadd.f32 %v1579, %v1607
        %1628 = vst [vmem:[%s227 + $0x20] sm:$0xff] %v1608
        %1629 = vst [vmem:[%s227 + $0x28] sm:$0xff] %v1609
        %1630 = vst [vmem:[%s227 + $0x60] sm:$0xff] %v1610
        %1631 = vst [vmem:[%s227 + $0x68] sm:$0xff] %v1611
        %1632 = vst [vmem:[%s227 + $0xa0] sm:$0xff] %v1612
        %1633 = vst [vmem:[%s227 + $0xa8] sm:$0xff] %v1613
        %1634 = vst [vmem:[%s227 + $0xe0] sm:$0xff] %v1614
        %1635 = vst [vmem:[%s227 + $0xe8] sm:$0xff] %v1615
        %1636 = vst [vmem:[%s227 + $0x120] sm:$0xff] %v1616
        %1637 = vst [vmem:[%s227 + $0x128] sm:$0xff] %v1617
        %1638 = vst [vmem:[%s227 + $0x160] sm:$0xff] %v1618
        %1639 = vst [vmem:[%s227 + $0x168] sm:$0xff] %v1619
        %1640 = vst [vmem:[%s227 + $0x1a0] sm:$0xff] %v1620
        %1641 = vst [vmem:[%s227 + $0x1a8] sm:$0xff] %v1621
        %1642 = vst [vmem:[%s227 + $0x1e0] sm:$0xff] %v1622
        %1643 = vst [vmem:[%s227 + $0x1e8] sm:$0xff] %v1623
        %1644 = vst [vmem:[%s227 + $0x220] sm:$0xff] %v1624
        %1645 = vst [vmem:[%s227 + $0x228] sm:$0xff] %v1625
        %1646 = vst [vmem:[%s227 + $0x260] sm:$0x1f] %v1626
        %1647 = vst [vmem:[%s227 + $0x268] sm:$0x1f] %v1627
        %v1648 = vld [vmem:[#allocation4 + $0x30] sm:$0xff]
        %v1649 = vld [vmem:[#allocation4 + $0x38] sm:$0xff]
        %v1650 = vld [vmem:[#allocation4 + $0x70] sm:$0xff]
        %v1651 = vld [vmem:[#allocation4 + $0x78] sm:$0xff]
        %v1652 = vld [vmem:[#allocation4 + $0xb0] sm:$0xff]
        %v1653 = vld [vmem:[#allocation4 + $0xb8] sm:$0xff]
        %v1654 = vld [vmem:[#allocation4 + $0xf0] sm:$0xff]
        %v1655 = vld [vmem:[#allocation4 + $0xf8] sm:$0xff]
        %v1656 = vld [vmem:[#allocation4 + $0x130] sm:$0xff]
        %v1657 = vld [vmem:[#allocation4 + $0x138] sm:$0xff]
        %v1658 = vld [vmem:[#allocation4 + $0x170] sm:$0xff]
        %v1659 = vld [vmem:[#allocation4 + $0x178] sm:$0xff]
        %v1660 = vld [vmem:[#allocation4 + $0x1b0] sm:$0xff]
        %v1661 = vld [vmem:[#allocation4 + $0x1b8] sm:$0xff]
        %v1662 = vld [vmem:[#allocation4 + $0x1f0] sm:$0xff]
        %v1663 = vld [vmem:[#allocation4 + $0x1f8] sm:$0xff]
        %v1664 = vld [vmem:[#allocation4 + $0x230] sm:$0xff]
        %v1665 = vld [vmem:[#allocation4 + $0x238] sm:$0xff]
        %v1666 = vld [vmem:[#allocation4 + $0x270] sm:$0x1f]
        %v1667 = vld [vmem:[#allocation4 + $0x278] sm:$0x1f]
        %v1668 = vlaneseq
        %v1669 = vshrl.u32 %v1668, 7
        %v1670 = vsub.s32 0, %v1669
        %v1671 = vrot.slane %v768, %v1670
        %v1672 = vlaneseq
        %v1673 = vshrl.u32 %v1672, 7
        %v1674 = vsub.s32 0, %v1673
        %v1675 = vrot.slane %v770, %v1674
        %v1676 = vmul.f32 %v805, %v1671
        %v1677 = vmul.f32 %v805, %v1675
        %v1678 = vmul.f32 %v810, %v1671
        %v1679 = vmul.f32 %v810, %v1675
        %v1680 = vmul.f32 %v815, %v1671
        %v1681 = vmul.f32 %v815, %v1675
        %v1682 = vmul.f32 %v820, %v1671
        %v1683 = vmul.f32 %v820, %v1675
        %v1684 = vmul.f32 %v825, %v1671
        %v1685 = vmul.f32 %v825, %v1675
        %v1686 = vmul.f32 %v830, %v1671
        %v1687 = vmul.f32 %v830, %v1675
        %v1688 = vmul.f32 %v835, %v1671
        %v1689 = vmul.f32 %v835, %v1675
        %v1690 = vmul.f32 %v840, %v1671
        %v1691 = vmul.f32 %v840, %v1675
        %v1692 = vmul.f32 %v845, %v1671
        %v1693 = vmul.f32 %v845, %v1675
        %v1694 = vmul.f32 %v850, %v1671
        %v1695 = vmul.f32 %v850, %v1675
        %v1696 = vadd.f32 %v1648, %v1676
        %v1697 = vadd.f32 %v1649, %v1677
        %v1698 = vadd.f32 %v1650, %v1678
        %v1699 = vadd.f32 %v1651, %v1679
        %v1700 = vadd.f32 %v1652, %v1680
        %v1701 = vadd.f32 %v1653, %v1681
        %v1702 = vadd.f32 %v1654, %v1682
        %v1703 = vadd.f32 %v1655, %v1683
        %v1704 = vadd.f32 %v1656, %v1684
        %v1705 = vadd.f32 %v1657, %v1685
        %v1706 = vadd.f32 %v1658, %v1686
        %v1707 = vadd.f32 %v1659, %v1687
        %v1708 = vadd.f32 %v1660, %v1688
        %v1709 = vadd.f32 %v1661, %v1689
        %v1710 = vadd.f32 %v1662, %v1690
        %v1711 = vadd.f32 %v1663, %v1691
        %v1712 = vadd.f32 %v1664, %v1692
        %v1713 = vadd.f32 %v1665, %v1693
        %v1714 = vadd.f32 %v1666, %v1694
        %v1715 = vadd.f32 %v1667, %v1695
        %v1716 = vlaneseq
        %v1717 = vshrl.u32 %v1716, 7
        %v1718 = vsub.s32 1, %v1717
        %v1719 = vrot.slane %v768, %v1718
        %v1720 = vlaneseq
        %v1721 = vshrl.u32 %v1720, 7
        %v1722 = vsub.s32 1, %v1721
        %v1723 = vrot.slane %v770, %v1722
        %v1724 = vmul.f32 %v902, %v1719
        %v1725 = vmul.f32 %v902, %v1723
        %v1726 = vmul.f32 %v906, %v1719
        %v1727 = vmul.f32 %v906, %v1723
        %v1728 = vmul.f32 %v910, %v1719
        %v1729 = vmul.f32 %v910, %v1723
        %v1730 = vmul.f32 %v914, %v1719
        %v1731 = vmul.f32 %v914, %v1723
        %v1732 = vmul.f32 %v918, %v1719
        %v1733 = vmul.f32 %v918, %v1723
        %v1734 = vmul.f32 %v922, %v1719
        %v1735 = vmul.f32 %v922, %v1723
        %v1736 = vmul.f32 %v926, %v1719
        %v1737 = vmul.f32 %v926, %v1723
        %v1738 = vmul.f32 %v930, %v1719
        %v1739 = vmul.f32 %v930, %v1723
        %v1740 = vmul.f32 %v934, %v1719
        %v1741 = vmul.f32 %v934, %v1723
        %v1742 = vmul.f32 %v938, %v1719
        %v1743 = vmul.f32 %v938, %v1723
        %v1744 = vadd.f32 %v1696, %v1724
        %v1745 = vadd.f32 %v1697, %v1725
        %v1746 = vadd.f32 %v1698, %v1726
        %v1747 = vadd.f32 %v1699, %v1727
        %v1748 = vadd.f32 %v1700, %v1728
        %v1749 = vadd.f32 %v1701, %v1729
        %v1750 = vadd.f32 %v1702, %v1730
        %v1751 = vadd.f32 %v1703, %v1731
        %v1752 = vadd.f32 %v1704, %v1732
        %v1753 = vadd.f32 %v1705, %v1733
        %v1754 = vadd.f32 %v1706, %v1734
        %v1755 = vadd.f32 %v1707, %v1735
        %v1756 = vadd.f32 %v1708, %v1736
        %v1757 = vadd.f32 %v1709, %v1737
        %v1758 = vadd.f32 %v1710, %v1738
        %v1759 = vadd.f32 %v1711, %v1739
        %v1760 = vadd.f32 %v1712, %v1740
        %v1761 = vadd.f32 %v1713, %v1741
        %v1762 = vadd.f32 %v1714, %v1742
        %v1763 = vadd.f32 %v1715, %v1743
        %v1764 = vlaneseq
        %v1765 = vshrl.u32 %v1764, 7
        %v1766 = vsub.s32 2, %v1765
        %v1767 = vrot.slane %v768, %v1766
        %v1768 = vlaneseq
        %v1769 = vshrl.u32 %v1768, 7
        %v1770 = vsub.s32 2, %v1769
        %v1771 = vrot.slane %v770, %v1770
        %v1772 = vmul.f32 %v990, %v1767
        %v1773 = vmul.f32 %v990, %v1771
        %v1774 = vmul.f32 %v994, %v1767
        %v1775 = vmul.f32 %v994, %v1771
        %v1776 = vmul.f32 %v998, %v1767
        %v1777 = vmul.f32 %v998, %v1771
        %v1778 = vmul.f32 %v1002, %v1767
        %v1779 = vmul.f32 %v1002, %v1771
        %v1780 = vmul.f32 %v1006, %v1767
        %v1781 = vmul.f32 %v1006, %v1771
        %v1782 = vmul.f32 %v1010, %v1767
        %v1783 = vmul.f32 %v1010, %v1771
        %v1784 = vmul.f32 %v1014, %v1767
        %v1785 = vmul.f32 %v1014, %v1771
        %v1786 = vmul.f32 %v1018, %v1767
        %v1787 = vmul.f32 %v1018, %v1771
        %v1788 = vmul.f32 %v1022, %v1767
        %v1789 = vmul.f32 %v1022, %v1771
        %v1790 = vmul.f32 %v1026, %v1767
        %v1791 = vmul.f32 %v1026, %v1771
        %v1792 = vadd.f32 %v1744, %v1772
        %v1793 = vadd.f32 %v1745, %v1773
        %v1794 = vadd.f32 %v1746, %v1774
        %v1795 = vadd.f32 %v1747, %v1775
        %v1796 = vadd.f32 %v1748, %v1776
        %v1797 = vadd.f32 %v1749, %v1777
        %v1798 = vadd.f32 %v1750, %v1778
        %v1799 = vadd.f32 %v1751, %v1779
        %v1800 = vadd.f32 %v1752, %v1780
        %v1801 = vadd.f32 %v1753, %v1781
        %v1802 = vadd.f32 %v1754, %v1782
        %v1803 = vadd.f32 %v1755, %v1783
        %v1804 = vadd.f32 %v1756, %v1784
        %v1805 = vadd.f32 %v1757, %v1785
        %v1806 = vadd.f32 %v1758, %v1786
        %v1807 = vadd.f32 %v1759, %v1787
        %v1808 = vadd.f32 %v1760, %v1788
        %v1809 = vadd.f32 %v1761, %v1789
        %v1810 = vadd.f32 %v1762, %v1790
        %v1811 = vadd.f32 %v1763, %v1791
        %v1812 = vlaneseq
        %v1813 = vshrl.u32 %v1812, 7
        %v1814 = vsub.s32 3, %v1813
        %v1815 = vrot.slane %v768, %v1814
        %v1816 = vlaneseq
        %v1817 = vshrl.u32 %v1816, 7
        %v1818 = vsub.s32 3, %v1817
        %v1819 = vrot.slane %v770, %v1818
        %v1820 = vmul.f32 %v1078, %v1815
        %v1821 = vmul.f32 %v1078, %v1819
        %v1822 = vmul.f32 %v1082, %v1815
        %v1823 = vmul.f32 %v1082, %v1819
        %v1824 = vmul.f32 %v1086, %v1815
        %v1825 = vmul.f32 %v1086, %v1819
        %v1826 = vmul.f32 %v1090, %v1815
        %v1827 = vmul.f32 %v1090, %v1819
        %v1828 = vmul.f32 %v1094, %v1815
        %v1829 = vmul.f32 %v1094, %v1819
        %v1830 = vmul.f32 %v1098, %v1815
        %v1831 = vmul.f32 %v1098, %v1819
        %v1832 = vmul.f32 %v1102, %v1815
        %v1833 = vmul.f32 %v1102, %v1819
        %v1834 = vmul.f32 %v1106, %v1815
        %v1835 = vmul.f32 %v1106, %v1819
        %v1836 = vmul.f32 %v1110, %v1815
        %v1837 = vmul.f32 %v1110, %v1819
        %v1838 = vmul.f32 %v1114, %v1815
        %v1839 = vmul.f32 %v1114, %v1819
        %v1840 = vadd.f32 %v1792, %v1820
        %v1841 = vadd.f32 %v1793, %v1821
        %v1842 = vadd.f32 %v1794, %v1822
        %v1843 = vadd.f32 %v1795, %v1823
        %v1844 = vadd.f32 %v1796, %v1824
        %v1845 = vadd.f32 %v1797, %v1825
        %v1846 = vadd.f32 %v1798, %v1826
        %v1847 = vadd.f32 %v1799, %v1827
        %v1848 = vadd.f32 %v1800, %v1828
        %v1849 = vadd.f32 %v1801, %v1829
        %v1850 = vadd.f32 %v1802, %v1830
        %v1851 = vadd.f32 %v1803, %v1831
        %v1852 = vadd.f32 %v1804, %v1832
        %v1853 = vadd.f32 %v1805, %v1833
        %v1854 = vadd.f32 %v1806, %v1834
        %v1855 = vadd.f32 %v1807, %v1835
        %v1856 = vadd.f32 %v1808, %v1836
        %v1857 = vadd.f32 %v1809, %v1837
        %v1858 = vadd.f32 %v1810, %v1838
        %v1859 = vadd.f32 %v1811, %v1839
        %1860 = vst [vmem:[%s227 + $0x30] sm:$0xff] %v1840
        %1861 = vst [vmem:[%s227 + $0x38] sm:$0xff] %v1841
        %1862 = vst [vmem:[%s227 + $0x70] sm:$0xff] %v1842
        %1863 = vst [vmem:[%s227 + $0x78] sm:$0xff] %v1843
        %1864 = vst [vmem:[%s227 + $0xb0] sm:$0xff] %v1844
        %1865 = vst [vmem:[%s227 + $0xb8] sm:$0xff] %v1845
        %1866 = vst [vmem:[%s227 + $0xf0] sm:$0xff] %v1846
        %1867 = vst [vmem:[%s227 + $0xf8] sm:$0xff] %v1847
        %1868 = vst [vmem:[%s227 + $0x130] sm:$0xff] %v1848
        %1869 = vst [vmem:[%s227 + $0x138] sm:$0xff] %v1849
        %1870 = vst [vmem:[%s227 + $0x170] sm:$0xff] %v1850
        %1871 = vst [vmem:[%s227 + $0x178] sm:$0xff] %v1851
        %1872 = vst [vmem:[%s227 + $0x1b0] sm:$0xff] %v1852
        %1873 = vst [vmem:[%s227 + $0x1b8] sm:$0xff] %v1853
        %1874 = vst [vmem:[%s227 + $0x1f0] sm:$0xff] %v1854
        %1875 = vst [vmem:[%s227 + $0x1f8] sm:$0xff] %v1855
        %1876 = vst [vmem:[%s227 + $0x230] sm:$0xff] %v1856
        %1877 = vst [vmem:[%s227 + $0x238] sm:$0xff] %v1857
        %1878 = vst [vmem:[%s227 + $0x270] sm:$0x1f] %v1858
        %1879 = vst [vmem:[%s227 + $0x278] sm:$0x1f] %v1859
        %p1880 = scmp.lt.s32.totalorder %s17, 1
        %s1881 = scalar_select %p1880, %s17, 1
        %s1882 = smul.addr %s1881, 80
        %s1883 = smul.addr %s1882, 8
        %s1884 = scalar_lea.vmem %s4, %s1883
        // Predicated region
        $region45: #{tpu_custom_call.1} parent=35 // pred_check
          %p1885 = pneg %p124
        $region46: #{tpu_custom_call.1} parent=35 // pred_check_branch
          %1887 = sbr.rel (%p1885) target = $region48
        $region47: #{tpu_custom_call.1} parent=35 // pred_region
          _
        $region48: #{tpu_custom_call.1} parent=35 // pred_fallthru
          _
      $region36: #{tpu_custom_call.1} parent=5 // pred_fallthru
        _
      %p1888 = scmp.le.s32.totalorder 2, %s12
      // Predicated region
      $region49: #{tpu_custom_call.1} parent=5 // pred_check
        %p1889 = pneg %p1888
      $region50: #{tpu_custom_call.1} parent=5 // pred_check_branch
        %1891 = sbr.rel (%p1889) target = $region52
      $region51: #{tpu_custom_call.1} parent=5 // pred_region
        %s1892 = ssub.s32 %s12, 2
        // Predicated region
        $region53: #{tpu_custom_call.1} parent=51 // pred_check
          %p1893 = pneg %p130
        $region54: #{tpu_custom_call.1} parent=51 // pred_check_branch
          %1895 = sbr.rel (%p1893) target = $region56
        $region55: #{tpu_custom_call.1} parent=51 // pred_region
          %p1896 = scmp.lt.s32.totalorder %s18, 1
          %s1897 = scalar_select %p1896, %s18, 1
          %s1898 = smul.addr %s1897, 80
          %s1899 = smul.addr %s1898, 8
          %s1900 = scalar_lea.vmem %s4, %s1899
        $region56: #{tpu_custom_call.1} parent=51 // pred_fallthru
          _
      $region52: #{tpu_custom_call.1} parent=5 // pred_fallthru
        _
    $region6: #{tpu_custom_call.1} parent=1 // loop_footer
      %s16 = sadd.s32 1, %s12
    $region7: #{tpu_custom_call.1} parent=1 // loop_footer_branch
      %11 = sbr.rel target = $region3
    $region8: #{tpu_custom_call.1} parent=1 // loop_exit
      _
    %1901 = vsyncpa [#allocation3], 1
    %s1902 = scalar_lea.sflag [#allocation3], 1
    %1903 = vsyncpa %s1902, 1
    %1904 = vsyncpa [#allocation5], 1

</llo_original>
